<compile_context>
chip_gen: v7x
topology: tpu7x:2x2x1
jax: 0.10.0
libtpu: 0.0.40
codegen_flags: <defaults>
</compile_context>

<pallas_src>
import functools
import math

import jax
import jax.numpy as jnp
from jax.experimental import pallas as pl
from jax.experimental.pallas import tpu as pltpu


# ----------------------------- fused Pallas kernel --------------------------

def dis_block_kernel(x_ref, m1_ref, b1_ref, m2_ref, b2_ref, msc_ref, bsc_ref,
                     *rest, H, HP, Nb, downsample):
    """Nb batch elements per grid step, activations in (rows, W*C) layout.

    x_ref  : (Nb, H, W*Cin)      f32 input block
    m1_ref : (3, W*Cin,  W*Chid) bf16 conv1 band matrices (one per kernel row)
    m2_ref : (3, W*Chid, Wout)   bf16 conv2 band matrices (col-pool pre-folded
                                 when downsample, so Wout = (W/2)*Cout)
    msc_ref: (W*Cin, Wout)       bf16 1x1 shortcut (col-pool pre-folded)
    b*_ref : (1, .)              f32 per-lane bias rows
    rest   : [pa_ref (H/2, H) f32 row-pool] if downsample, then o_ref and the
             shared padded VMEM scratch (Nb*HP, max(W*Cin, W*Chid)) f32.
    """
    if downsample:
        pa_ref, o_ref, pad_ref = rest
    else:
        o_ref, pad_ref = rest

    bf16 = jnp.bfloat16
    dot = functools.partial(jnp.dot, preferred_element_type=jnp.float32)

    wc_in = m1_ref.shape[1]          # W*Cin
    wc_hid = m1_ref.shape[2]         # W*Chid
    wc_pad = pad_ref.shape[1]        # max(W*Cin, W*Chid)
    P = Nb * HP                      # rows of the stacked padded scratch

    # --- place relu(x) into the zero-padded interior of each band -----------
    # Only halo/filler rows are (re)zeroed; interiors are fully overwritten.
    top_zero = jnp.zeros((1, wc_pad), jnp.float32)
    bot_zero = jnp.zeros((HP - H - 1, wc_pad), jnp.float32)
    xs = []
    for b in range(Nb):
        r0 = b * HP
        x_b = x_ref[b]                                   # (H, W*Cin) f32
        xs.append(x_b)
        pad_ref[r0:r0 + 1, :] = top_zero
        pad_ref[r0 + H + 1:r0 + HP, :] = bot_zero
        pad_ref[r0 + 1:r0 + 1 + H, 0:wc_in] = jnp.maximum(x_b, 0.0)

    def conv3(m_ref, b_ref, width):
        # 3 row-tap MXU dots over the whole stacked slab (rows straddling band
        # boundaries are junk and are simply never read back).  bf16 operands,
        # f32 accumulation -> a single MXU pass per tap.
        acc = dot(pad_ref[0:P - 2, 0:width].astype(bf16), m_ref[0])
        acc = acc + dot(pad_ref[1:P - 1, 0:width].astype(bf16), m_ref[1])
        acc = acc + dot(pad_ref[2:P, 0:width].astype(bf16), m_ref[2])
        return acc + b_ref[...]

    # --- residual: relu -> conv1 (+b1) -> relu -> conv2 (+b2, pooled cols) ---
    h = conv3(m1_ref, b1_ref, wc_in)                     # (P-2, W*Chid) f32
    for b in range(Nb):
        r0 = b * HP
        pad_ref[r0 + 1:r0 + 1 + H, 0:wc_hid] = jnp.maximum(h[r0:r0 + H, :], 0.0)
    r = conv3(m2_ref, b2_ref, wc_hid)                    # (P-2, Wout) f32

    # --- shortcut (1x1 conv), combine, row-pool, store (per element) --------
    for b in range(Nb):
        r0 = b * HP
        sc = dot(xs[b].astype(bf16), msc_ref[...]) + bsc_ref[...]   # (H, Wout)
        s = r[r0:r0 + H, :] + sc
        if downsample:
            s = dot(pa_ref[...], s)                      # (H/2, Wout)
        o_ref[b] = s.astype(o_ref.dtype)


# ----------------------------- wrapper ---------------------------------------

def _band_matrices(w_hwio, W, pad):
    """Per-kernel-row banded matmul matrices for a KxK conv in (H, W*C) layout.

    Returns (K, W*Cin, W*Cout) with
      M[dy, wu*Cin+ci, w*Cout+co] = w_hwio[dy, wu-w+pad, ci, co] (0 if OOB tap).
    Width zero-padding is implicit (missing source columns simply absent).
    """
    K = w_hwio.shape[0]
    Cin, Cout = w_hwio.shape[2], w_hwio.shape[3]
    mats = []
    for dy in range(K):
        m = jnp.zeros((W * Cin, W * Cout), jnp.float32)
        for dx in range(K):
            shift = jnp.eye(W, k=pad - dx, dtype=jnp.float32)
            m = m + jnp.kron(shift, w_hwio[dy, dx])
        mats.append(m)
    return jnp.stack(mats)


def dis_block_forward(x_nchw, params, *, downsample=True, batch_block=1):
    """disBlock.forward: residual(x) + shortcut(x) (learnable shortcut, Cin != Cout)."""
    N, Cin, H, W = x_nchw.shape
    K = params["w1"].shape[0]
    assert K == 3, "kernel assumes ksize=3, pad=1 (disBlock defaults)"
    Chid = params["w1"].shape[3]
    Cout = params["w2"].shape[3]
    Nb = batch_block
    assert N % Nb == 0
    if downsample:
        assert H % 2 == 0 and W % 2 == 0

    # NCHW -> (N, H, W*Cin): rows on sublanes, W and C merged on lanes.
    x2d = jnp.transpose(x_nchw, (0, 2, 3, 1)).reshape(N, H, W * Cin)

    hi = jax.lax.Precision.HIGHEST
    m1 = _band_matrices(params["w1"], W, pad=1)                     # (3, W*Cin,  W*Chid)
    m2 = _band_matrices(params["w2"], W, pad=1)                     # (3, W*Chid, W*Cout)
    msc = jnp.kron(jnp.eye(W, dtype=jnp.float32), params["wsc"][0, 0])

    if downsample:
        H2, W2 = H // 2, W // 2
        # 2x2 avg-pool = (row-pool pa) @ s @ (col-pool pb); pb is folded into
        # the conv2 / shortcut weights (exact up to reassociation).
        pa = 0.5 * jnp.repeat(jnp.eye(H2, dtype=jnp.float32), 2, axis=1)           # (H2, H)
        pb = jnp.kron(0.5 * jnp.repeat(jnp.eye(W2, dtype=jnp.float32), 2, axis=0),
                      jnp.eye(Cout, dtype=jnp.float32))                            # (W*Cout, W2*Cout)
        m2 = jnp.einsum("kab,bc->kac", m2, pb, precision=hi)
        msc = jnp.dot(msc, pb, precision=hi)
        Wp, out_rows = W2, H2
    else:
        Wp, out_rows = W, H

    wout = Wp * Cout
    b1r = jnp.tile(params["b1"], W).reshape(1, W * Chid)
    b2r = jnp.tile(params["b2"], Wp).reshape(1, wout)   # col-pool of per-channel bias = itself
    bscr = jnp.tile(params["bsc"], Wp).reshape(1, wout)

    # bf16 band matrices: single-pass MXU dots, half the weight VMEM / DMA.
    m1 = m1.astype(jnp.bfloat16)
    m2 = m2.astype(jnp.bfloat16)
    msc = msc.astype(jnp.bfloat16)

    HP = H + 2 if Nb == 1 else -(-(H + 2) // 8) * 8      # 8-aligned band stride
    wc_pad = max(W * Cin, W * Chid)

    inputs = [x2d, m1, b1r, m2, b2r, msc, bscr]
    in_specs = [
        pl.BlockSpec((Nb, H, W * Cin), lambda n: (n, 0, 0)),
        pl.BlockSpec((3, W * Cin, W * Chid), lambda n: (0, 0, 0)),
        pl.BlockSpec((1, W * Chid), lambda n: (0, 0)),
        pl.BlockSpec((3, W * Chid, wout), lambda n: (0, 0, 0)),
        pl.BlockSpec((1, wout), lambda n: (0, 0)),
        pl.BlockSpec((W * Cin, wout), lambda n: (0, 0)),
        pl.BlockSpec((1, wout), lambda n: (0, 0)),
    ]
    if downsample:
        inputs.append(pa)
        in_specs.append(pl.BlockSpec((out_rows, H), lambda n: (0, 0)))

    steps = N // Nb
    P = Nb * HP
    flops = 2 * steps * (3 * (P - 2) * (W * Cin) * (W * Chid)
                         + 3 * (P - 2) * (W * Chid) * wout
                         + Nb * H * (W * Cin) * wout
                         + (Nb * out_rows * H * wout if downsample else 0))
    bytes_accessed = (4 * N * H * W * Cin + 4 * N * out_rows * wout
                      + 2 * (3 * W * Cin * W * Chid + 3 * W * Chid * wout
                             + W * Cin * wout)
                      + 4 * (W * Chid + 2 * wout)
                      + (4 * out_rows * H if downsample else 0))

    kern = functools.partial(dis_block_kernel, H=H, HP=HP, Nb=Nb,
                             downsample=downsample)
    out = pl.pallas_call(
        kern,
        out_shape=jax.ShapeDtypeStruct((N, out_rows, wout), jnp.float32),
        grid_spec=pltpu.PrefetchScalarGridSpec(
            num_scalar_prefetch=0,
            grid=(steps,),
            in_specs=in_specs,
            out_specs=pl.BlockSpec((Nb, out_rows, wout), lambda n: (n, 0, 0)),
            scratch_shapes=[pltpu.VMEM((Nb * HP, wc_pad), jnp.float32)],
        ),
        compiler_params=pltpu.CompilerParams(
            dimension_semantics=("parallel",),
            vmem_limit_bytes=32 * 1024 * 1024),
        cost_estimate=pl.CostEstimate(flops=flops, transcendentals=0,
                                      bytes_accessed=bytes_accessed),
    )(*inputs)

    # (N, H', W'*Cout) -> NCHW
    return jnp.transpose(out.reshape(N, out_rows, Wp, Cout), (0, 3, 1, 2))


# ------------------------- parameter construction ---------------------------

def xavier_uniform(key, shape_oikk, gain):
    cout, cin, kh, kw = shape_oikk
    fan_in, fan_out = cin * kh * kw, cout * kh * kw
    bound = gain * math.sqrt(6.0 / (fan_in + fan_out))
    return jax.random.uniform(key, shape_oikk, jnp.float32, -bound, bound)


def conv_bias(key, cin, k, cout):
    bound = 1.0 / math.sqrt(cin * k * k)
    return jax.random.uniform(key, (cout,), jnp.float32, -bound, bound)


def spectral_normalize(key, w_oikk, n_iter=1, eps=1e-12):
    """PyTorch nn.utils.spectral_norm semantics (one power iteration) at param-setup time."""
    cout = w_oikk.shape[0]
    wm = w_oikk.reshape(cout, -1)
    u = jax.random.normal(key, (cout,), jnp.float32)
    u = u / (jnp.linalg.norm(u) + eps)
    v = jnp.zeros((wm.shape[1],), jnp.float32)
    for _ in range(n_iter):
        v = wm.T @ u
        v = v / (jnp.linalg.norm(v) + eps)
        u = wm @ v
        u = u / (jnp.linalg.norm(u) + eps)
    sigma = u @ (wm @ v)
    return w_oikk / sigma


def make_params(key, cin, cout, hidden, ksize=3):
    ks = jax.random.split(key, 8)
    w1 = spectral_normalize(ks[3], xavier_uniform(ks[0], (hidden, cin, ksize, ksize), math.sqrt(2.0)))
    w2 = spectral_normalize(ks[4], xavier_uniform(ks[1], (cout, hidden, ksize, ksize), math.sqrt(2.0)))
    wsc = spectral_normalize(ks[5], xavier_uniform(ks[2], (cout, cin, 1, 1), 1.0))
    return {
        # OIHW -> HWIO
        "w1": jnp.transpose(w1, (2, 3, 1, 0)),
        "b1": conv_bias(ks[6], cin, ksize, hidden),
        "w2": jnp.transpose(w2, (2, 3, 1, 0)),
        "b2": conv_bias(ks[7], hidden, ksize, cout),
        "wsc": jnp.transpose(wsc, (2, 3, 1, 0)),
        "bsc": jnp.zeros((cout,), jnp.float32) + 0.01,
    }


# ------------------------------ reference -----------------------------------

def reference_forward(x_nchw, params, *, downsample=True):
    x = jnp.transpose(x_nchw, (0, 2, 3, 1))

    def conv(v, w, b, pad):
        out = jax.lax.conv_general_dilated(
            v, w, (1, 1), [(pad, pad), (pad, pad)],
            dimension_numbers=("NHWC", "HWIO", "NHWC"),
            precision=jax.lax.Precision.HIGHEST)
        return out + b

    h = conv(jnp.maximum(x, 0.0), params["w1"], params["b1"], 1)
    h = conv(jnp.maximum(h, 0.0), params["w2"], params["b2"], 1)
    sc = conv(x, params["wsc"], params["bsc"], 0)

    def pool(t):
        return 0.25 * (t[:, 0::2, 0::2, :] + t[:, 0::2, 1::2, :]
                       + t[:, 1::2, 0::2, :] + t[:, 1::2, 1::2, :])

    out = pool(h) + pool(sc) if downsample else h + sc
    return jnp.transpose(out, (0, 3, 1, 2))


# -------------------------------- main ---------------------------------------

if __name__ == "__main__":
    key = jax.random.PRNGKey(0)
    kx, kp = jax.random.split(key)

    # disBlock(in_channels=4, out_channels=8, downsample=True) -> learnable shortcut
    N, Cin, H, W = 2, 4, 16, 16
    Cout, hidden = 8, Cin
    x = jax.random.normal(kx, (N, Cin, H, W), jnp.float32)
    params = make_params(kp, Cin, Cout, hidden)

    # Tolerance: single-pass bf16 MXU (per perf review) vs the f32-HIGHEST
    # reference costs ~3e-3 absolute at these magnitudes.
    ATOL = RTOL = 2e-2

    # downsample=True, all N batched into one grid step (bigger matmul M-dim).
    ref = jax.block_until_ready(reference_forward(x, params, downsample=True))
    out = jax.block_until_ready(dis_block_forward(x, params, downsample=True,
                                                  batch_block=2))
    assert out.shape == (N, Cout, H // 2, W // 2), out.shape
    assert jnp.allclose(out, ref, atol=ATOL, rtol=RTOL), \
        float(jnp.max(jnp.abs(out - ref)))

    # downsample=True, one element per grid step (grid=2 -> both v7x cores).
    out1 = jax.block_until_ready(dis_block_forward(x, params, downsample=True,
                                                   batch_block=1))
    assert jnp.allclose(out1, ref, atol=ATOL, rtol=RTOL), \
        float(jnp.max(jnp.abs(out1 - ref)))

    # downsample=False path (still learnable shortcut since Cin != Cout).
    ref2 = jax.block_until_ready(reference_forward(x, params, downsample=False))
    out2 = jax.block_until_ready(dis_block_forward(x, params, downsample=False,
                                                   batch_block=1))
    assert out2.shape == (N, Cout, H, W), out2.shape
    assert jnp.allclose(out2, ref2, atol=ATOL, rtol=RTOL), \
        float(jnp.max(jnp.abs(out2 - ref2)))

    print("KERNEL_OK")
</pallas_src>

<mosaic_0001>
module attributes {stable_mosaic.version = 11 : i64} {
  func.func @dis_block_kernel(%arg0: i32, %arg1: memref<2x16x64xf32, #tpu.memory_space<vmem>>, %arg2: memref<3x64x64xbf16, #tpu.memory_space<vmem>>, %arg3: memref<1x64xf32, #tpu.memory_space<vmem>>, %arg4: memref<3x64x64xbf16, #tpu.memory_space<vmem>>, %arg5: memref<1x64xf32, #tpu.memory_space<vmem>>, %arg6: memref<64x64xbf16, #tpu.memory_space<vmem>>, %arg7: memref<1x64xf32, #tpu.memory_space<vmem>>, %arg8: memref<8x16xf32, #tpu.memory_space<vmem>>, %arg9: memref<2x8x64xf32, #tpu.memory_space<vmem>>, %arg10: memref<48x64xf32, #tpu.memory_space<vmem>>) attributes {dimension_semantics = [#tpu.dimension_semantics<parallel>], iteration_bounds = array<i64: 1>, scalar_prefetch = 0 : i64, scratch_operands = 1 : i64, tpu.core_type = #tpu.core_type<tc>, window_params = [{transform_indices = @transform_0, window_bounds = array<i64: 2, 16, 64>}, {pipeline_mode = #tpu.pipeline_mode<synchronous>, transform_indices = @transform_1, window_bounds = array<i64: 3, 64, 64>}, {pipeline_mode = #tpu.pipeline_mode<synchronous>, transform_indices = @transform_2, window_bounds = array<i64: 1, 64>}, {pipeline_mode = #tpu.pipeline_mode<synchronous>, transform_indices = @transform_3, window_bounds = array<i64: 3, 64, 64>}, {pipeline_mode = #tpu.pipeline_mode<synchronous>, transform_indices = @transform_4, window_bounds = array<i64: 1, 64>}, {pipeline_mode = #tpu.pipeline_mode<synchronous>, transform_indices = @transform_5, window_bounds = array<i64: 64, 64>}, {pipeline_mode = #tpu.pipeline_mode<synchronous>, transform_indices = @transform_6, window_bounds = array<i64: 1, 64>}, {pipeline_mode = #tpu.pipeline_mode<synchronous>, transform_indices = @transform_7, window_bounds = array<i64: 8, 16>}, {transform_indices = @transform_8, window_bounds = array<i64: 2, 8, 64>}]} {
    %cst = arith.constant 0.000000e+00 : f32
    %0 = vector.broadcast %cst : f32 to vector<1x64xf32>
    %cst_0 = arith.constant 0.000000e+00 : f32
    %1 = vector.broadcast %cst_0 : f32 to vector<7x64xf32>
    %c0 = arith.constant 0 : index
    %c0_1 = arith.constant 0 : index
    %c0_2 = arith.constant 0 : index
    %2 = vector.load %arg1[%c0, %c0_1, %c0_2] : memref<2x16x64xf32, #tpu.memory_space<vmem>>, vector<1x16x64xf32>
    %3 = vector.shape_cast %2 : vector<1x16x64xf32> to vector<16x64xf32>
    %c0_3 = arith.constant 0 : index
    %c0_4 = arith.constant 0 : index
    %4 = vector.load %arg10[%c0_3, %c0_4] : memref<48x64xf32, #tpu.memory_space<vmem>>, vector<1x64xf32>
    tpu.vector_store %arg10[%c0_3, %c0_4], %0 {strides = array<i32>} : memref<48x64xf32, #tpu.memory_space<vmem>>, vector<1x64xf32>,
    %c17 = arith.constant 17 : index
    %c0_5 = arith.constant 0 : index
    %5 = vector.load %arg10[%c17, %c0_5] : memref<48x64xf32, #tpu.memory_space<vmem>>, vector<7x64xf32>
    tpu.vector_store %arg10[%c17, %c0_5], %1 {strides = array<i32>} : memref<48x64xf32, #tpu.memory_space<vmem>>, vector<7x64xf32>,
    %cst_6 = arith.constant 0.000000e+00 : f32
    %6 = vector.broadcast %cst_6 : f32 to vector<16x64xf32>
    %7 = arith.maximumf %3, %6 : vector<16x64xf32>
    %c1 = arith.constant 1 : index
    %c0_7 = arith.constant 0 : index
    %8 = vector.load %arg10[%c1, %c0_7] : memref<48x64xf32, #tpu.memory_space<vmem>>, vector<16x64xf32>
    tpu.vector_store %arg10[%c1, %c0_7], %7 {strides = array<i32>} : memref<48x64xf32, #tpu.memory_space<vmem>>, vector<16x64xf32>,
    %c1_8 = arith.constant 1 : index
    %c0_9 = arith.constant 0 : index
    %c0_10 = arith.constant 0 : index
    %9 = vector.load %arg1[%c1_8, %c0_9, %c0_10] : memref<2x16x64xf32, #tpu.memory_space<vmem>>, vector<1x16x64xf32>
    %10 = vector.shape_cast %9 : vector<1x16x64xf32> to vector<16x64xf32>
    %c24 = arith.constant 24 : index
    %c0_11 = arith.constant 0 : index
    %11 = vector.load %arg10[%c24, %c0_11] : memref<48x64xf32, #tpu.memory_space<vmem>>, vector<1x64xf32>
    tpu.vector_store %arg10[%c24, %c0_11], %0 {strides = array<i32>} : memref<48x64xf32, #tpu.memory_space<vmem>>, vector<1x64xf32>,
    %c41 = arith.constant 41 : index
    %c0_12 = arith.constant 0 : index
    %12 = vector.load %arg10[%c41, %c0_12] : memref<48x64xf32, #tpu.memory_space<vmem>>, vector<7x64xf32>
    tpu.vector_store %arg10[%c41, %c0_12], %1 {strides = array<i32>} : memref<48x64xf32, #tpu.memory_space<vmem>>, vector<7x64xf32>,
    %cst_13 = arith.constant 0.000000e+00 : f32
    %13 = vector.broadcast %cst_13 : f32 to vector<16x64xf32>
    %14 = arith.maximumf %10, %13 : vector<16x64xf32>
    %c25 = arith.constant 25 : index
    %c0_14 = arith.constant 0 : index
    %15 = vector.load %arg10[%c25, %c0_14] : memref<48x64xf32, #tpu.memory_space<vmem>>, vector<16x64xf32>
    tpu.vector_store %arg10[%c25, %c0_14], %14 {strides = array<i32>} : memref<48x64xf32, #tpu.memory_space<vmem>>, vector<16x64xf32>,
    %c0_15 = arith.constant 0 : index
    %c0_16 = arith.constant 0 : index
    %16 = vector.load %arg10[%c0_15, %c0_16] : memref<48x64xf32, #tpu.memory_space<vmem>>, vector<46x64xf32>
    %17 = arith.truncf %16 : vector<46x64xf32> to vector<46x64xbf16>
    %c0_17 = arith.constant 0 : index
    %c0_18 = arith.constant 0 : index
    %c0_19 = arith.constant 0 : index
    %18 = vector.load %arg2[%c0_17, %c0_18, %c0_19] : memref<3x64x64xbf16, #tpu.memory_space<vmem>>, vector<1x64x64xbf16>
    %19 = vector.shape_cast %18 : vector<1x64x64xbf16> to vector<64x64xbf16>
    %cst_20 = arith.constant dense<0.000000e+00> : vector<46x64xf32>
    %20 = tpu.matmul %17, %19, %cst_20 {dimension_numbers = #tpu.dot_dimension_numbers<[1], [0], [0], [1], [0, 0, 1, 1], [], []>} : vector<46x64xbf16>, vector<64x64xbf16>, vector<46x64xf32> -> vector<46x64xf32>
    %c1_21 = arith.constant 1 : index
    %c0_22 = arith.constant 0 : index
    %21 = vector.load %arg10[%c1_21, %c0_22] : memref<48x64xf32, #tpu.memory_space<vmem>>, vector<46x64xf32>
    %22 = arith.truncf %21 : vector<46x64xf32> to vector<46x64xbf16>
    %c1_23 = arith.constant 1 : index
    %c0_24 = arith.constant 0 : index
    %c0_25 = arith.constant 0 : index
    %23 = vector.load %arg2[%c1_23, %c0_24, %c0_25] : memref<3x64x64xbf16, #tpu.memory_space<vmem>>, vector<1x64x64xbf16>
    %24 = vector.shape_cast %23 : vector<1x64x64xbf16> to vector<64x64xbf16>
    %cst_26 = arith.constant dense<0.000000e+00> : vector<46x64xf32>
    %25 = tpu.matmul %22, %24, %cst_26 {dimension_numbers = #tpu.dot_dimension_numbers<[1], [0], [0], [1], [0, 0, 1, 1], [], []>} : vector<46x64xbf16>, vector<64x64xbf16>, vector<46x64xf32> -> vector<46x64xf32>
    %26 = arith.addf %20, %25 : vector<46x64xf32>
    %c2 = arith.constant 2 : index
    %c0_27 = arith.constant 0 : index
    %27 = vector.load %arg10[%c2, %c0_27] : memref<48x64xf32, #tpu.memory_space<vmem>>, vector<46x64xf32>
    %28 = arith.truncf %27 : vector<46x64xf32> to vector<46x64xbf16>
    %c2_28 = arith.constant 2 : index
    %c0_29 = arith.constant 0 : index
    %c0_30 = arith.constant 0 : index
    %29 = vector.load %arg2[%c2_28, %c0_29, %c0_30] : memref<3x64x64xbf16, #tpu.memory_space<vmem>>, vector<1x64x64xbf16>
    %30 = vector.shape_cast %29 : vector<1x64x64xbf16> to vector<64x64xbf16>
    %cst_31 = arith.constant dense<0.000000e+00> : vector<46x64xf32>
    %31 = tpu.matmul %28, %30, %cst_31 {dimension_numbers = #tpu.dot_dimension_numbers<[1], [0], [0], [1], [0, 0, 1, 1], [], []>} : vector<46x64xbf16>, vector<64x64xbf16>, vector<46x64xf32> -> vector<46x64xf32>
    %32 = arith.addf %26, %31 : vector<46x64xf32>
    %c0_32 = arith.constant 0 : index
    %c0_33 = arith.constant 0 : index
    %33 = vector.load %arg3[%c0_32, %c0_33] : memref<1x64xf32, #tpu.memory_space<vmem>>, vector<1x64xf32>
    %34 = vector.broadcast %33 : vector<1x64xf32> to vector<46x64xf32>
    %35 = arith.addf %32, %34 : vector<46x64xf32>
    %36 = vector.extract_strided_slice %35 {offsets = [0, 0], sizes = [16, 64], strides = [1, 1]} : vector<46x64xf32> to vector<16x64xf32>
    %cst_34 = arith.constant 0.000000e+00 : f32
    %37 = vector.broadcast %cst_34 : f32 to vector<16x64xf32>
    %38 = arith.maximumf %36, %37 : vector<16x64xf32>
    %c1_35 = arith.constant 1 : index
    %c0_36 = arith.constant 0 : index
    %39 = vector.load %arg10[%c1_35, %c0_36] : memref<48x64xf32, #tpu.memory_space<vmem>>, vector<16x64xf32>
    tpu.vector_store %arg10[%c1_35, %c0_36], %38 {strides = array<i32>} : memref<48x64xf32, #tpu.memory_space<vmem>>, vector<16x64xf32>,
    %40 = vector.extract_strided_slice %35 {offsets = [24, 0], sizes = [16, 64], strides = [1, 1]} : vector<46x64xf32> to vector<16x64xf32>
    %cst_37 = arith.constant 0.000000e+00 : f32
    %41 = vector.broadcast %cst_37 : f32 to vector<16x64xf32>
    %42 = arith.maximumf %40, %41 : vector<16x64xf32>
    %c25_38 = arith.constant 25 : index
    %c0_39 = arith.constant 0 : index
    %43 = vector.load %arg10[%c25_38, %c0_39] : memref<48x64xf32, #tpu.memory_space<vmem>>, vector<16x64xf32>
    tpu.vector_store %arg10[%c25_38, %c0_39], %42 {strides = array<i32>} : memref<48x64xf32, #tpu.memory_space<vmem>>, vector<16x64xf32>,
    %c0_40 = arith.constant 0 : index
    %c0_41 = arith.constant 0 : index
    %44 = vector.load %arg10[%c0_40, %c0_41] : memref<48x64xf32, #tpu.memory_space<vmem>>, vector<46x64xf32>
    %45 = arith.truncf %44 : vector<46x64xf32> to vector<46x64xbf16>
    %c0_42 = arith.constant 0 : index
    %c0_43 = arith.constant 0 : index
    %c0_44 = arith.constant 0 : index
    %46 = vector.load %arg4[%c0_42, %c0_43, %c0_44] : memref<3x64x64xbf16, #tpu.memory_space<vmem>>, vector<1x64x64xbf16>
    %47 = vector.shape_cast %46 : vector<1x64x64xbf16> to vector<64x64xbf16>
    %cst_45 = arith.constant dense<0.000000e+00> : vector<46x64xf32>
    %48 = tpu.matmul %45, %47, %cst_45 {dimension_numbers = #tpu.dot_dimension_numbers<[1], [0], [0], [1], [0, 0, 1, 1], [], []>} : vector<46x64xbf16>, vector<64x64xbf16>, vector<46x64xf32> -> vector<46x64xf32>
    %c1_46 = arith.constant 1 : index
    %c0_47 = arith.constant 0 : index
    %49 = vector.load %arg10[%c1_46, %c0_47] : memref<48x64xf32, #tpu.memory_space<vmem>>, vector<46x64xf32>
    %50 = arith.truncf %49 : vector<46x64xf32> to vector<46x64xbf16>
    %c1_48 = arith.constant 1 : index
    %c0_49 = arith.constant 0 : index
    %c0_50 = arith.constant 0 : index
    %51 = vector.load %arg4[%c1_48, %c0_49, %c0_50] : memref<3x64x64xbf16, #tpu.memory_space<vmem>>, vector<1x64x64xbf16>
    %52 = vector.shape_cast %51 : vector<1x64x64xbf16> to vector<64x64xbf16>
    %cst_51 = arith.constant dense<0.000000e+00> : vector<46x64xf32>
    %53 = tpu.matmul %50, %52, %cst_51 {dimension_numbers = #tpu.dot_dimension_numbers<[1], [0], [0], [1], [0, 0, 1, 1], [], []>} : vector<46x64xbf16>, vector<64x64xbf16>, vector<46x64xf32> -> vector<46x64xf32>
    %54 = arith.addf %48, %53 : vector<46x64xf32>
    %c2_52 = arith.constant 2 : index
    %c0_53 = arith.constant 0 : index
    %55 = vector.load %arg10[%c2_52, %c0_53] : memref<48x64xf32, #tpu.memory_space<vmem>>, vector<46x64xf32>
    %56 = arith.truncf %55 : vector<46x64xf32> to vector<46x64xbf16>
    %c2_54 = arith.constant 2 : index
    %c0_55 = arith.constant 0 : index
    %c0_56 = arith.constant 0 : index
    %57 = vector.load %arg4[%c2_54, %c0_55, %c0_56] : memref<3x64x64xbf16, #tpu.memory_space<vmem>>, vector<1x64x64xbf16>
    %58 = vector.shape_cast %57 : vector<1x64x64xbf16> to vector<64x64xbf16>
    %cst_57 = arith.constant dense<0.000000e+00> : vector<46x64xf32>
    %59 = tpu.matmul %56, %58, %cst_57 {dimension_numbers = #tpu.dot_dimension_numbers<[1], [0], [0], [1], [0, 0, 1, 1], [], []>} : vector<46x64xbf16>, vector<64x64xbf16>, vector<46x64xf32> -> vector<46x64xf32>
    %60 = arith.addf %54, %59 : vector<46x64xf32>
    %c0_58 = arith.constant 0 : index
    %c0_59 = arith.constant 0 : index
    %61 = vector.load %arg5[%c0_58, %c0_59] : memref<1x64xf32, #tpu.memory_space<vmem>>, vector<1x64xf32>
    %62 = vector.broadcast %61 : vector<1x64xf32> to vector<46x64xf32>
    %63 = arith.addf %60, %62 : vector<46x64xf32>
    %64 = arith.truncf %3 : vector<16x64xf32> to vector<16x64xbf16>
    %c0_60 = arith.constant 0 : index
    %c0_61 = arith.constant 0 : index
    %65 = vector.load %arg6[%c0_60, %c0_61] : memref<64x64xbf16, #tpu.memory_space<vmem>>, vector<64x64xbf16>
    %cst_62 = arith.constant dense<0.000000e+00> : vector<16x64xf32>
    %66 = tpu.matmul %64, %65, %cst_62 {dimension_numbers = #tpu.dot_dimension_numbers<[1], [0], [0], [1], [0, 0, 1, 1], [], []>} : vector<16x64xbf16>, vector<64x64xbf16>, vector<16x64xf32> -> vector<16x64xf32>
    %c0_63 = arith.constant 0 : index
    %c0_64 = arith.constant 0 : index
    %67 = vector.load %arg7[%c0_63, %c0_64] : memref<1x64xf32, #tpu.memory_space<vmem>>, vector<1x64xf32>
    %68 = vector.broadcast %67 : vector<1x64xf32> to vector<16x64xf32>
    %69 = arith.addf %66, %68 : vector<16x64xf32>
    %70 = vector.extract_strided_slice %63 {offsets = [0, 0], sizes = [16, 64], strides = [1, 1]} : vector<46x64xf32> to vector<16x64xf32>
    %71 = arith.addf %70, %69 : vector<16x64xf32>
    %c0_65 = arith.constant 0 : index
    %c0_66 = arith.constant 0 : index
    %72 = vector.load %arg8[%c0_65, %c0_66] : memref<8x16xf32, #tpu.memory_space<vmem>>, vector<8x16xf32>
    %cst_67 = arith.constant dense<0.000000e+00> : vector<8x64xf32>
    %73 = tpu.matmul %72, %71, %cst_67 {dimension_numbers = #tpu.dot_dimension_numbers<[1], [0], [0], [1], [0, 0, 1, 1], [], []>} : vector<8x16xf32>, vector<16x64xf32>, vector<8x64xf32> -> vector<8x64xf32>
    %c0_68 = arith.constant 0 : index
    %c0_69 = arith.constant 0 : index
    %c0_70 = arith.constant 0 : index
    %74 = vector.load %arg9[%c0_68, %c0_69, %c0_70] : memref<2x8x64xf32, #tpu.memory_space<vmem>>, vector<1x8x64xf32>
    %75 = vector.shape_cast %74 : vector<1x8x64xf32> to vector<8x64xf32>
    %76 = vector.shape_cast %73 : vector<8x64xf32> to vector<1x8x64xf32>
    tpu.vector_store %arg9[%c0_68, %c0_69, %c0_70], %76 {strides = array<i32>} : memref<2x8x64xf32, #tpu.memory_space<vmem>>, vector<1x8x64xf32>,
    %77 = arith.truncf %10 : vector<16x64xf32> to vector<16x64xbf16>
    %c0_71 = arith.constant 0 : index
    %c0_72 = arith.constant 0 : index
    %78 = vector.load %arg6[%c0_71, %c0_72] : memref<64x64xbf16, #tpu.memory_space<vmem>>, vector<64x64xbf16>
    %cst_73 = arith.constant dense<0.000000e+00> : vector<16x64xf32>
    %79 = tpu.matmul %77, %78, %cst_73 {dimension_numbers = #tpu.dot_dimension_numbers<[1], [0], [0], [1], [0, 0, 1, 1], [], []>} : vector<16x64xbf16>, vector<64x64xbf16>, vector<16x64xf32> -> vector<16x64xf32>
    %c0_74 = arith.constant 0 : index
    %c0_75 = arith.constant 0 : index
    %80 = vector.load %arg7[%c0_74, %c0_75] : memref<1x64xf32, #tpu.memory_space<vmem>>, vector<1x64xf32>
    %81 = vector.broadcast %80 : vector<1x64xf32> to vector<16x64xf32>
    %82 = arith.addf %79, %81 : vector<16x64xf32>
    %83 = vector.extract_strided_slice %63 {offsets = [24, 0], sizes = [16, 64], strides = [1, 1]} : vector<46x64xf32> to vector<16x64xf32>
    %84 = arith.addf %83, %82 : vector<16x64xf32>
    %c0_76 = arith.constant 0 : index
    %c0_77 = arith.constant 0 : index
    %85 = vector.load %arg8[%c0_76, %c0_77] : memref<8x16xf32, #tpu.memory_space<vmem>>, vector<8x16xf32>
    %cst_78 = arith.constant dense<0.000000e+00> : vector<8x64xf32>
    %86 = tpu.matmul %85, %84, %cst_78 {dimension_numbers = #tpu.dot_dimension_numbers<[1], [0], [0], [1], [0, 0, 1, 1], [], []>} : vector<8x16xf32>, vector<16x64xf32>, vector<8x64xf32> -> vector<8x64xf32>
    %c1_79 = arith.constant 1 : index
    %c0_80 = arith.constant 0 : index
    %c0_81 = arith.constant 0 : index
    %87 = vector.load %arg9[%c1_79, %c0_80, %c0_81] : memref<2x8x64xf32, #tpu.memory_space<vmem>>, vector<1x8x64xf32>
    %88 = vector.shape_cast %87 : vector<1x8x64xf32> to vector<8x64xf32>
    %89 = vector.shape_cast %86 : vector<8x64xf32> to vector<1x8x64xf32>
    tpu.vector_store %arg9[%c1_79, %c0_80, %c0_81], %89 {strides = array<i32>} : memref<2x8x64xf32, #tpu.memory_space<vmem>>, vector<1x8x64xf32>,
    return
  }
  func.func @transform_0(%arg0: i32) -> (i32, i32, i32) {
    %c0_i32 = arith.constant 0 : i32
    %c0_i32_0 = arith.constant 0 : i32
    %c0_i32_1 = arith.constant 0 : i32
    return %arg0, %c0_i32, %c0_i32_0 : i32, i32, i32
  }
  func.func @transform_1(%arg0: i32) -> (i32, i32, i32) {
    %c0_i32 = arith.constant 0 : i32
    %c0_i32_0 = arith.constant 0 : i32
    %c0_i32_1 = arith.constant 0 : i32
    %c0_i32_2 = arith.constant 0 : i32
    return %c0_i32, %c0_i32_0, %c0_i32_1 : i32, i32, i32
  }
  func.func @transform_2(%arg0: i32) -> (i32, i32) {
    %c0_i32 = arith.constant 0 : i32
    %c0_i32_0 = arith.constant 0 : i32
    %c0_i32_1 = arith.constant 0 : i32
    return %c0_i32, %c0_i32_0 : i32, i32
  }
  func.func @transform_3(%arg0: i32) -> (i32, i32, i32) {
    %c0_i32 = arith.constant 0 : i32
    %c0_i32_0 = arith.constant 0 : i32
    %c0_i32_1 = arith.constant 0 : i32
    %c0_i32_2 = arith.constant 0 : i32
    return %c0_i32, %c0_i32_0, %c0_i32_1 : i32, i32, i32
  }
  func.func @transform_4(%arg0: i32) -> (i32, i32) {
    %c0_i32 = arith.constant 0 : i32
    %c0_i32_0 = arith.constant 0 : i32
    %c0_i32_1 = arith.constant 0 : i32
    return %c0_i32, %c0_i32_0 : i32, i32
  }
  func.func @transform_5(%arg0: i32) -> (i32, i32) {
    %c0_i32 = arith.constant 0 : i32
    %c0_i32_0 = arith.constant 0 : i32
    %c0_i32_1 = arith.constant 0 : i32
    return %c0_i32, %c0_i32_0 : i32, i32
  }
  func.func @transform_6(%arg0: i32) -> (i32, i32) {
    %c0_i32 = arith.constant 0 : i32
    %c0_i32_0 = arith.constant 0 : i32
    %c0_i32_1 = arith.constant 0 : i32
    return %c0_i32, %c0_i32_0 : i32, i32
  }
  func.func @transform_7(%arg0: i32) -> (i32, i32) {
    %c0_i32 = arith.constant 0 : i32
    %c0_i32_0 = arith.constant 0 : i32
    %c0_i32_1 = arith.constant 0 : i32
    return %c0_i32, %c0_i32_0 : i32, i32
  }
  func.func @transform_8(%arg0: i32) -> (i32, i32, i32) {
    %c0_i32 = arith.constant 0 : i32
    %c0_i32_0 = arith.constant 0 : i32
    %c0_i32_1 = arith.constant 0 : i32
    return %arg0, %c0_i32, %c0_i32_0 : i32, i32, i32
  }
}

</mosaic_0001>

<llo_original>
// kernel: tpu_custom_call.1
$region0: #{tpu_custom_call.1}
  #allocation0 [shape = 'u32[]', space=smem, size = 0x4, offset = 0x4, fixed_abs, tag = 'smem constant byte address 0x4 - core index']
  #allocation1 [shape = 'u32[144,128]{1,0:T(1,128)}', space=vmem, size = 0x12000, scoped, tag = 'internal scratch']
  #allocation2 [shape = 'f32[48,64]{1,0:T(8,128)}', space=vmem, size = 0x6000, scoped, tag = 'scratch operand']
  %s0 = inlined_call_operand.hbm [shape: f32[2,16,64], index: 0, kind: input, shape index: {}]
  %s1 = inlined_call_operand.hbm [shape: bf16[3,64,64], index: 1, kind: input, shape index: {}]
  %s2 = inlined_call_operand.vmem [shape: f32[1,64], index: 2, kind: input, shape index: {}]
  %s3 = inlined_call_operand.hbm [shape: bf16[3,64,64], index: 3, kind: input, shape index: {}]
  %s4 = inlined_call_operand.vmem [shape: f32[1,64], index: 4, kind: input, shape index: {}]
  %s5 = inlined_call_operand.hbm [shape: bf16[64,64], index: 5, kind: input, shape index: {}]
  %s6 = inlined_call_operand.vmem [shape: f32[1,64], index: 6, kind: input, shape index: {}]
  %s7 = inlined_call_operand.vmem [shape: f32[8,16], index: 7, kind: input, shape index: {}]
  %s8 = inlined_call_operand.hbm [shape: f32[2,8,64], index: 8, kind: output, shape index: {}]
  %s9 = sld [smem:[#allocation0]]
  $region58: #{tpu_custom_call.1} parent=0
    _
  %s11 = ssub.s32 1, %s9
  %s12 = scalar_select 0, %s11, %s9
  $region1: #{tpu_custom_call.1} parent=0
    #allocation3 [shape = 'u8[16384]{0}', space=vmem, size = 0x4000, scoped, tag = 'input window, operand 0, single buffered']
    #allocation4 [shape = 's32[1]{0}', space=sflag, size = 0x4, scoped, tag = 'scoped memory for tpu_custom_call.1']
    #allocation5 [shape = 's32[1]{0}', space=sflag, size = 0x4, scoped, tag = 'scoped memory for tpu_custom_call.1']
    #allocation6 [shape = 'u8[49152]{0}', space=vmem, size = 0xc000, scoped, tag = 'input window, operand 1, single buffered']
    #allocation7 [shape = 's32[1]{0}', space=sflag, size = 0x4, scoped, tag = 'scoped memory for tpu_custom_call.1']
    #allocation8 [shape = 'u8[49152]{0}', space=vmem, size = 0xc000, scoped, tag = 'input window, operand 3, single buffered']
    #allocation9 [shape = 'u8[16384]{0}', space=vmem, size = 0x4000, scoped, tag = 'input window, operand 5, single buffered']
    #allocation10 [shape = 's32[1]{0}', space=sflag, size = 0x4, scoped, tag = 'scoped memory for tpu_custom_call.1']
    #allocation11 [shape = 'u8[8192]{0}', space=vmem, size = 0x2000, scoped, tag = 'output window, operand 0, single buffered']
    %13 = vsyncpa [#allocation4], 0
    %14 = vsyncpa [#allocation7], 0
    %15 = vsyncpa [#allocation10], 0
    %16 = vsyncpa [#allocation5], 0
    // Predicated region
    $region2: #{tpu_custom_call.1} parent=1 // pred_check
      _
    $region3: #{tpu_custom_call.1} parent=1 // pred_check_branch
      %18 = sbr.rel (0) target = $region5
    $region4: #{tpu_custom_call.1} parent=1 // pred_region
      %s20 = ssub.s32 512, 512
      %21 = vsyncadd [#allocation4], %s20
      %s22 = sshll.u32 [#allocation3], 4
      %s23 = int_to_ptr.vmem [resolvable:$true] %s22
      %28 = dma.hbm_to_vmem [thread:$0]  %s0, 512, %s23, [#allocation4], 128, 128, 8
    $region5: #{tpu_custom_call.1} parent=1 // pred_fallthru
      _
    // Predicated region
    $region6: #{tpu_custom_call.1} parent=1 // pred_check
      _
    $region7: #{tpu_custom_call.1} parent=1 // pred_check_branch
      %30 = sbr.rel (0) target = $region9
    $region8: #{tpu_custom_call.1} parent=1 // pred_region
      %s32 = ssub.s32 1536, 1536
      %33 = vsyncadd [#allocation7], %s32
      %s34 = sshll.u32 [#allocation6], 4
      %s35 = int_to_ptr.vmem [resolvable:$true] %s34
      %40 = dma.hbm_to_vmem [thread:$0]  %s1, 1536, %s35, [#allocation7], 64, 64, 4
    $region9: #{tpu_custom_call.1} parent=1 // pred_fallthru
      _
    // Predicated region
    $region10: #{tpu_custom_call.1} parent=1 // pred_check
      _
    $region11: #{tpu_custom_call.1} parent=1 // pred_check_branch
      %42 = sbr.rel (0) target = $region13
    $region12: #{tpu_custom_call.1} parent=1 // pred_region
      _
    $region13: #{tpu_custom_call.1} parent=1 // pred_fallthru
      _
    // Predicated region
    $region14: #{tpu_custom_call.1} parent=1 // pred_check
      _
    $region15: #{tpu_custom_call.1} parent=1 // pred_check_branch
      %44 = sbr.rel (0) target = $region17
    $region16: #{tpu_custom_call.1} parent=1 // pred_region
      %s46 = ssub.s32 1536, 1536
      %47 = vsyncadd [#allocation7], %s46
      %s48 = sshll.u32 [#allocation8], 4
      %s49 = int_to_ptr.vmem [resolvable:$true] %s48
      %54 = dma.hbm_to_vmem [thread:$0]  %s3, 1536, %s49, [#allocation7], 64, 64, 4
    $region17: #{tpu_custom_call.1} parent=1 // pred_fallthru
      _
    // Predicated region
    $region18: #{tpu_custom_call.1} parent=1 // pred_check
      _
    $region19: #{tpu_custom_call.1} parent=1 // pred_check_branch
      %56 = sbr.rel (0) target = $region21
    $region20: #{tpu_custom_call.1} parent=1 // pred_region
      _
    $region21: #{tpu_custom_call.1} parent=1 // pred_fallthru
      _
    // Predicated region
    $region22: #{tpu_custom_call.1} parent=1 // pred_check
      _
    $region23: #{tpu_custom_call.1} parent=1 // pred_check_branch
      %58 = sbr.rel (0) target = $region25
    $region24: #{tpu_custom_call.1} parent=1 // pred_region
      %s60 = ssub.s32 512, 512
      %61 = vsyncadd [#allocation10], %s60
      %s62 = sshll.u32 [#allocation9], 4
      %s63 = int_to_ptr.vmem [resolvable:$true] %s62
      %68 = dma.hbm_to_vmem [thread:$0]  %s5, 512, %s63, [#allocation10], 64, 64, 4
    $region25: #{tpu_custom_call.1} parent=1 // pred_fallthru
      _
    // Predicated region
    $region26: #{tpu_custom_call.1} parent=1 // pred_check
      _
    $region27: #{tpu_custom_call.1} parent=1 // pred_check_branch
      %70 = sbr.rel (0) target = $region29
    $region28: #{tpu_custom_call.1} parent=1 // pred_region
      _
    $region29: #{tpu_custom_call.1} parent=1 // pred_fallthru
      _
    // Predicated region
    $region30: #{tpu_custom_call.1} parent=1 // pred_check
      _
    $region31: #{tpu_custom_call.1} parent=1 // pred_check_branch
      %72 = sbr.rel (0) target = $region33
    $region32: #{tpu_custom_call.1} parent=1 // pred_region
      _
    $region33: #{tpu_custom_call.1} parent=1 // pred_fallthru
      _
    // Predicated region
    $region34: #{tpu_custom_call.1} parent=1 // pred_check
      _
    $region35: #{tpu_custom_call.1} parent=1 // pred_check_branch
      %74 = sbr.rel (0) target = $region37
    $region36: #{tpu_custom_call.1} parent=1 // pred_region
      %75 = dma.done [#allocation4], 512
    $region37: #{tpu_custom_call.1} parent=1 // pred_fallthru
      _
    // Predicated region
    $region38: #{tpu_custom_call.1} parent=1 // pred_check
      _
    $region39: #{tpu_custom_call.1} parent=1 // pred_check_branch
      %77 = sbr.rel (0) target = $region41
    $region40: #{tpu_custom_call.1} parent=1 // pred_region
      %78 = dma.done [#allocation7], 1536
    $region41: #{tpu_custom_call.1} parent=1 // pred_fallthru
      _
    // Predicated region
    $region42: #{tpu_custom_call.1} parent=1 // pred_check
      _
    $region43: #{tpu_custom_call.1} parent=1 // pred_check_branch
      %80 = sbr.rel (0) target = $region45
    $region44: #{tpu_custom_call.1} parent=1 // pred_region
      %81 = dma.done [#allocation7], 1536
    $region45: #{tpu_custom_call.1} parent=1 // pred_fallthru
      _
    // Predicated region
    $region46: #{tpu_custom_call.1} parent=1 // pred_check
      _
    $region47: #{tpu_custom_call.1} parent=1 // pred_check_branch
      %83 = sbr.rel (0) target = $region49
    $region48: #{tpu_custom_call.1} parent=1 // pred_region
      %84 = dma.done [#allocation10], 512
    $region49: #{tpu_custom_call.1} parent=1 // pred_fallthru
      _
    %v86 = vld [vmem:[#allocation3] sm:$0xff]
    %v87 = vld [vmem:[#allocation3 + $0x8] sm:$0xff]
    %vm88 = vcmask 516096
    %89 = vst.msk [vmem:[#allocation2] sm:$0x1] %vm88, 0.0
    %vm90 = vcmask 522240
    %91 = vst.msk [vmem:[#allocation2 + $0x11] sm:$0x7f] %vm90, 0.0
    %v92 = vmax.f32 %v86, 0.0
    %v93 = vmax.f32 %v87, 0.0
    %vm94 = vcmask 523264
    %95 = vst.msk [vmem:[#allocation2 + $0x1] sm:$0xff] %vm94, %v92
    %96 = vst.msk [vmem:[#allocation2 + $0x9] sm:$0xff] %vm94, %v93
    %s97 = scalar_lea.vmem [#allocation3], 16
    %v98 = vld [vmem:[%s97] sm:$0xff]
    %v99 = vld [vmem:[%s97 + $0x8] sm:$0xff]
    %100 = vst.msk [vmem:[#allocation2 + $0x18] sm:$0x1] %vm88, 0.0
    %101 = vst.msk [vmem:[#allocation2 + $0x29] sm:$0x7f] %vm90, 0.0
    %v102 = vmax.f32 %v98, 0.0
    %v103 = vmax.f32 %v99, 0.0
    %104 = vst.msk [vmem:[#allocation2 + $0x19] sm:$0xff] %vm94, %v102
    %105 = vst.msk [vmem:[#allocation2 + $0x21] sm:$0xff] %vm94, %v103
    %v106 = vld [vmem:[#allocation2] sm:$0xff]
    %v107 = vld [vmem:[#allocation2 + $0x8] sm:$0xff]
    %v108 = vld [vmem:[#allocation2 + $0x10] sm:$0xff]
    %v109 = vld [vmem:[#allocation2 + $0x18] sm:$0xff]
    %v110 = vld [vmem:[#allocation2 + $0x20] sm:$0xff]
    %v111 = vld [vmem:[#allocation2 + $0x28] sm:$0x3f]
    %v112 = vpack.c.bf16 %v107, %v106
    %v113 = vpack.c.bf16 %v109, %v108
    %v114 = vpack.c.bf16 %v111, %v110
    %v115 = vld [vmem:[#allocation6] sm:$0xf]
    %v116 = vld [vmem:[#allocation6 + $0x4] sm:$0xf]
    %v117 = vld [vmem:[#allocation6 + $0x8] sm:$0xf]
    %v118 = vld [vmem:[#allocation6 + $0xc] sm:$0xf]
    %v119 = vld [vmem:[#allocation6 + $0x10] sm:$0xf]
    %v120 = vld [vmem:[#allocation6 + $0x14] sm:$0xf]
    %v121 = vld [vmem:[#allocation6 + $0x18] sm:$0xf]
    %v122 = vld [vmem:[#allocation6 + $0x1c] sm:$0xf]
    %v123 = vld [vmem:[#allocation2 + $0x1] sm:$0xff]
    %v124 = vld [vmem:[#allocation2 + $0x9] sm:$0xff]
    %v125 = vld [vmem:[#allocation2 + $0x11] sm:$0xff]
    %v126 = vld [vmem:[#allocation2 + $0x19] sm:$0xff]
    %v127 = vld [vmem:[#allocation2 + $0x21] sm:$0xff]
    %v128 = vld [vmem:[#allocation2 + $0x29] sm:$0x3f]
    %v129 = vpack.c.bf16 %v124, %v123
    %v130 = vpack.c.bf16 %v126, %v125
    %v131 = vpack.c.bf16 %v128, %v127
    %s132 = scalar_lea.vmem [#allocation6], 32
    %v133 = vld [vmem:[%s132] sm:$0xf]
    %v134 = vld [vmem:[%s132 + $0x4] sm:$0xf]
    %v135 = vld [vmem:[%s132 + $0x8] sm:$0xf]
    %v136 = vld [vmem:[%s132 + $0xc] sm:$0xf]
    %v137 = vld [vmem:[%s132 + $0x10] sm:$0xf]
    %v138 = vld [vmem:[%s132 + $0x14] sm:$0xf]
    %v139 = vld [vmem:[%s132 + $0x18] sm:$0xf]
    %v140 = vld [vmem:[%s132 + $0x1c] sm:$0xf]
    %v149 = vunpack.c.l.b16 %v133
    %v150 = vunpack.c.l.b16 %v134
    %v151 = vunpack.c.l.b16 %v135
    %v152 = vunpack.c.l.b16 %v136
    %v153 = vunpack.c.l.b16 %v137
    %v154 = vunpack.c.l.b16 %v138
    %v155 = vunpack.c.l.b16 %v139
    %v156 = vunpack.c.l.b16 %v140
    %v157 = vpack.c.b16 %v150, %v149
    %v158 = vpack.c.b16 %v152, %v151
    %v159 = vpack.c.b16 %v154, %v153
    %v160 = vpack.c.b16 %v156, %v155
    %v166 = vsel %vm94, %v129, 0
    %v169 = vsel %vm94, %v130, 0
    %v172 = vsel %vm94, %v131, 0
    %174 = vmatprep.subr.bf16.mxu0 0
    %175 = vmatpush1.bf16.msra.mxu0 %v157
    %176 = vmatprep.subr.bf16.mxu0 0
    %177 = vmatpush1.bf16.msra.mxu0 %v158
    %178 = vmatprep.subr.bf16.mxu0 0
    %179 = vmatpush1.bf16.msra.mxu0 %v159
    %180 = vmatprep.subr.bf16.mxu0 0
    %181 = vmatpush1.bf16.msra.mxu0 %v160
    %182 = vmatprep.subr.bf16.mxu0 0
    %183 = vmatpush1.bf16.msra.mxu0 0
    %184 = vmatprep.subr.bf16.mxu0 0
    %185 = vmatpush1.bf16.msra.mxu0 0
    %186 = vmatprep.subr.bf16.mxu0 0
    %187 = vmatpush1.bf16.msra.mxu0 0
    %188 = vmatprep.subr.bf16.mxu0 0
    %189 = vmatpush1.bf16.msra.mxu0 0
    %190 = vmatprep.subr.bf16.mxu0 0
    %191 = vmatpush1.bf16.msra.mxu0 0
    %192 = vmatprep.subr.bf16.mxu0 0
    %193 = vmatpush1.bf16.msra.mxu0 0
    %194 = vmatprep.subr.bf16.mxu0 0
    %195 = vmatpush1.bf16.msra.mxu0 0
    %196 = vmatprep.subr.bf16.mxu0 0
    %197 = vmatpush1.bf16.msra.mxu0 0
    %198 = vmatprep.subr.bf16.mxu0 0
    %199 = vmatpush1.bf16.msra.mxu0 0
    %200 = vmatprep.subr.bf16.mxu0 0
    %201 = vmatpush1.bf16.msra.mxu0 0
    %202 = vmatprep.subr.bf16.mxu0 0
    %203 = vmatpush1.bf16.msra.mxu0 0
    %204 = vmatprep.subr.bf16.mxu0 0
    %205 = vmatpush1.bf16.msra.mxu0 0
    %206 = vmatprep.mubr.bf16.mxu0 0
    %207 = vmatmul.mubr.bf16.gmra.mrb[0].mxu0 %v166
    %v208 = vpop.f32.mrb[0].mxu0
    %v209 = vadd.f32 0.0, %v208
    %v210 = vpop.f32.mrb[0].mxu0
    %v211 = vpop.f32.mrb[0].mxu0
    %v212 = vadd.f32 0.0, %v211
    %v213 = vpop.f32.mrb[0].mxu0
    %214 = vmatprep.mubr.bf16.mxu0 0
    %215 = vmatmul.mubr.bf16.gmra.mrb[0].mxu0 %v169
    %v216 = vpop.f32.mrb[0].mxu0
    %v217 = vpop.f32.mrb[0].mxu0
    %v218 = vpop.f32.mrb[0].mxu0
    %v219 = vadd.f32 0.0, %v218
    %v220 = vpop.f32.mrb[0].mxu0
    %221 = vmatprep.mubr.bf16.mxu0 0
    %222 = vmatmul.mubr.bf16.gmra.mrb[0].mxu0 %v172
    %v223 = vpop.f32.mrb[0].mxu0
    %v224 = vadd.f32 0.0, %v223
    %v225 = vpop.f32.mrb[0].mxu0
    %v226 = vpop.f32.mrb[0].mxu0
    %v227 = vpop.f32.mrb[0].mxu0
    %228 = vdwg.mxu0
    %v237 = vunpack.c.l.b16 %v115
    %v238 = vunpack.c.l.b16 %v116
    %v239 = vunpack.c.l.b16 %v117
    %v240 = vunpack.c.l.b16 %v118
    %v241 = vunpack.c.l.b16 %v119
    %v242 = vunpack.c.l.b16 %v120
    %v243 = vunpack.c.l.b16 %v121
    %v244 = vunpack.c.l.b16 %v122
    %v245 = vpack.c.b16 %v238, %v237
    %v246 = vpack.c.b16 %v240, %v239
    %v247 = vpack.c.b16 %v242, %v241
    %v248 = vpack.c.b16 %v244, %v243
    %v254 = vsel %vm94, %v112, 0
    %v257 = vsel %vm94, %v113, 0
    %v260 = vsel %vm94, %v114, 0
    %262 = vmatprep.subr.bf16.mxu0 0
    %263 = vmatpush1.bf16.msra.mxu0 %v245
    %264 = vmatprep.subr.bf16.mxu0 0
    %265 = vmatpush1.bf16.msra.mxu0 %v246
    %266 = vmatprep.subr.bf16.mxu0 0
    %267 = vmatpush1.bf16.msra.mxu0 %v247
    %268 = vmatprep.subr.bf16.mxu0 0
    %269 = vmatpush1.bf16.msra.mxu0 %v248
    %270 = vmatprep.subr.bf16.mxu0 0
    %271 = vmatpush1.bf16.msra.mxu0 0
    %272 = vmatprep.subr.bf16.mxu0 0
    %273 = vmatpush1.bf16.msra.mxu0 0
    %274 = vmatprep.subr.bf16.mxu0 0
    %275 = vmatpush1.bf16.msra.mxu0 0
    %276 = vmatprep.subr.bf16.mxu0 0
    %277 = vmatpush1.bf16.msra.mxu0 0
    %278 = vmatprep.subr.bf16.mxu0 0
    %279 = vmatpush1.bf16.msra.mxu0 0
    %280 = vmatprep.subr.bf16.mxu0 0
    %281 = vmatpush1.bf16.msra.mxu0 0
    %282 = vmatprep.subr.bf16.mxu0 0
    %283 = vmatpush1.bf16.msra.mxu0 0
    %284 = vmatprep.subr.bf16.mxu0 0
    %285 = vmatpush1.bf16.msra.mxu0 0
    %286 = vmatprep.subr.bf16.mxu0 0
    %287 = vmatpush1.bf16.msra.mxu0 0
    %288 = vmatprep.subr.bf16.mxu0 0
    %289 = vmatpush1.bf16.msra.mxu0 0
    %290 = vmatprep.subr.bf16.mxu0 0
    %291 = vmatpush1.bf16.msra.mxu0 0
    %292 = vmatprep.subr.bf16.mxu0 0
    %293 = vmatpush1.bf16.msra.mxu0 0
    %294 = vmatprep.mubr.bf16.mxu0 0
    %295 = vmatmul.mubr.bf16.gmra.mrb[0].mxu0 %v254
    %v296 = vpop.f32.mrb[0].mxu0
    %v297 = vadd.f32 %v209, %v296
    %v298 = vpop.f32.mrb[0].mxu0
    %v299 = vpop.f32.mrb[0].mxu0
    %v300 = vadd.f32 %v212, %v299
    %v301 = vpop.f32.mrb[0].mxu0
    %302 = vmatprep.mubr.bf16.mxu0 0
    %303 = vmatmul.mubr.bf16.gmra.mrb[0].mxu0 %v257
    %v304 = vpop.f32.mrb[0].mxu0
    %v305 = vpop.f32.mrb[0].mxu0
    %v306 = vpop.f32.mrb[0].mxu0
    %v307 = vadd.f32 %v219, %v306
    %v308 = vpop.f32.mrb[0].mxu0
    %309 = vmatprep.mubr.bf16.mxu0 0
    %310 = vmatmul.mubr.bf16.gmra.mrb[0].mxu0 %v260
    %v311 = vpop.f32.mrb[0].mxu0
    %v312 = vadd.f32 %v224, %v311
    %v313 = vpop.f32.mrb[0].mxu0
    %v314 = vpop.f32.mrb[0].mxu0
    %v315 = vpop.f32.mrb[0].mxu0
    %316 = vdwg.mxu0
    %v317 = vld [vmem:[#allocation2 + $0x2] sm:$0xff]
    %v318 = vld [vmem:[#allocation2 + $0xa] sm:$0xff]
    %v319 = vld [vmem:[#allocation2 + $0x12] sm:$0xff]
    %v320 = vld [vmem:[#allocation2 + $0x1a] sm:$0xff]
    %v321 = vld [vmem:[#allocation2 + $0x22] sm:$0xff]
    %v322 = vld [vmem:[#allocation2 + $0x2a] sm:$0x3f]
    %v323 = vpack.c.bf16 %v318, %v317
    %v324 = vpack.c.bf16 %v320, %v319
    %v325 = vpack.c.bf16 %v322, %v321
    %s326 = scalar_lea.vmem [#allocation6], 64
    %v327 = vld [vmem:[%s326] sm:$0xf]
    %v328 = vld [vmem:[%s326 + $0x4] sm:$0xf]
    %v329 = vld [vmem:[%s326 + $0x8] sm:$0xf]
    %v330 = vld [vmem:[%s326 + $0xc] sm:$0xf]
    %v331 = vld [vmem:[%s326 + $0x10] sm:$0xf]
    %v332 = vld [vmem:[%s326 + $0x14] sm:$0xf]
    %v333 = vld [vmem:[%s326 + $0x18] sm:$0xf]
    %v334 = vld [vmem:[%s326 + $0x1c] sm:$0xf]
    %v343 = vunpack.c.l.b16 %v327
    %v344 = vunpack.c.l.b16 %v328
    %v345 = vunpack.c.l.b16 %v329
    %v346 = vunpack.c.l.b16 %v330
    %v347 = vunpack.c.l.b16 %v331
    %v348 = vunpack.c.l.b16 %v332
    %v349 = vunpack.c.l.b16 %v333
    %v350 = vunpack.c.l.b16 %v334
    %v351 = vpack.c.b16 %v344, %v343
    %v352 = vpack.c.b16 %v346, %v345
    %v353 = vpack.c.b16 %v348, %v347
    %v354 = vpack.c.b16 %v350, %v349
    %v360 = vsel %vm94, %v323, 0
    %v363 = vsel %vm94, %v324, 0
    %v366 = vsel %vm94, %v325, 0
    %368 = vmatprep.subr.bf16.mxu0 0
    %369 = vmatpush1.bf16.msra.mxu0 %v351
    %370 = vmatprep.subr.bf16.mxu0 0
    %371 = vmatpush1.bf16.msra.mxu0 %v352
    %372 = vmatprep.subr.bf16.mxu0 0
    %373 = vmatpush1.bf16.msra.mxu0 %v353
    %374 = vmatprep.subr.bf16.mxu0 0
    %375 = vmatpush1.bf16.msra.mxu0 %v354
    %376 = vmatprep.subr.bf16.mxu0 0
    %377 = vmatpush1.bf16.msra.mxu0 0
    %378 = vmatprep.subr.bf16.mxu0 0
    %379 = vmatpush1.bf16.msra.mxu0 0
    %380 = vmatprep.subr.bf16.mxu0 0
    %381 = vmatpush1.bf16.msra.mxu0 0
    %382 = vmatprep.subr.bf16.mxu0 0
    %383 = vmatpush1.bf16.msra.mxu0 0
    %384 = vmatprep.subr.bf16.mxu0 0
    %385 = vmatpush1.bf16.msra.mxu0 0
    %386 = vmatprep.subr.bf16.mxu0 0
    %387 = vmatpush1.bf16.msra.mxu0 0
    %388 = vmatprep.subr.bf16.mxu0 0
    %389 = vmatpush1.bf16.msra.mxu0 0
    %390 = vmatprep.subr.bf16.mxu0 0
    %391 = vmatpush1.bf16.msra.mxu0 0
    %392 = vmatprep.subr.bf16.mxu0 0
    %393 = vmatpush1.bf16.msra.mxu0 0
    %394 = vmatprep.subr.bf16.mxu0 0
    %395 = vmatpush1.bf16.msra.mxu0 0
    %396 = vmatprep.subr.bf16.mxu0 0
    %397 = vmatpush1.bf16.msra.mxu0 0
    %398 = vmatprep.subr.bf16.mxu0 0
    %399 = vmatpush1.bf16.msra.mxu0 0
    %400 = vmatprep.mubr.bf16.mxu0 0
    %401 = vmatmul.mubr.bf16.gmra.mrb[0].mxu0 %v360
    %v402 = vpop.f32.mrb[0].mxu0
    %v403 = vadd.f32 0.0, %v402
    %v404 = vpop.f32.mrb[0].mxu0
    %v405 = vpop.f32.mrb[0].mxu0
    %v406 = vadd.f32 0.0, %v405
    %v407 = vpop.f32.mrb[0].mxu0
    %408 = vmatprep.mubr.bf16.mxu0 0
    %409 = vmatmul.mubr.bf16.gmra.mrb[0].mxu0 %v363
    %v410 = vpop.f32.mrb[0].mxu0
    %v411 = vpop.f32.mrb[0].mxu0
    %v412 = vpop.f32.mrb[0].mxu0
    %v413 = vadd.f32 0.0, %v412
    %v414 = vpop.f32.mrb[0].mxu0
    %415 = vmatprep.mubr.bf16.mxu0 0
    %416 = vmatmul.mubr.bf16.gmra.mrb[0].mxu0 %v366
    %v417 = vpop.f32.mrb[0].mxu0
    %v418 = vadd.f32 0.0, %v417
    %v419 = vpop.f32.mrb[0].mxu0
    %v420 = vpop.f32.mrb[0].mxu0
    %v421 = vpop.f32.mrb[0].mxu0
    %422 = vdwg.mxu0
    %v423 = vadd.f32 %v297, %v403
    %v424 = vadd.f32 %v300, %v406
    %v425 = vadd.f32 %v307, %v413
    %v426 = vadd.f32 %v312, %v418
    %v427 = vld [vmem:[%s2] sm:$0x1]
    %v429 = vlaneseq
    %v430 = vshrl.u32 %v429, 7
    %v431 = vsub.s32 0, %v430
    %v432 = vrot.slane %v427, %v431
    %v434 = vadd.f32 %v423, %v432
    %v435 = vadd.f32 %v424, %v432
    %v436 = vadd.f32 %v425, %v432
    %v437 = vadd.f32 %v426, %v432
    %v438 = vmax.f32 %v434, 0.0
    %v439 = vmax.f32 %v435, 0.0
    %440 = vst.msk [vmem:[#allocation2 + $0x1] sm:$0xff] %vm94, %v438
    %441 = vst.msk [vmem:[#allocation2 + $0x9] sm:$0xff] %vm94, %v439
    %v442 = vmax.f32 %v436, 0.0
    %v443 = vmax.f32 %v437, 0.0
    %444 = vst.msk [vmem:[#allocation2 + $0x19] sm:$0xff] %vm94, %v442
    %445 = vst.msk [vmem:[#allocation2 + $0x21] sm:$0xff] %vm94, %v443
    %v446 = vld [vmem:[#allocation2] sm:$0xff]
    %v447 = vld [vmem:[#allocation2 + $0x8] sm:$0xff]
    %v448 = vld [vmem:[#allocation2 + $0x10] sm:$0xff]
    %v449 = vld [vmem:[#allocation2 + $0x18] sm:$0xff]
    %v450 = vld [vmem:[#allocation2 + $0x20] sm:$0xff]
    %v451 = vld [vmem:[#allocation2 + $0x28] sm:$0x3f]
    %v452 = vpack.c.bf16 %v447, %v446
    %v453 = vpack.c.bf16 %v449, %v448
    %v454 = vpack.c.bf16 %v451, %v450
    %v455 = vld [vmem:[#allocation8] sm:$0xf]
    %v456 = vld [vmem:[#allocation8 + $0x4] sm:$0xf]
    %v457 = vld [vmem:[#allocation8 + $0x8] sm:$0xf]
    %v458 = vld [vmem:[#allocation8 + $0xc] sm:$0xf]
    %v459 = vld [vmem:[#allocation8 + $0x10] sm:$0xf]
    %v460 = vld [vmem:[#allocation8 + $0x14] sm:$0xf]
    %v461 = vld [vmem:[#allocation8 + $0x18] sm:$0xf]
    %v462 = vld [vmem:[#allocation8 + $0x1c] sm:$0xf]
    %v463 = vld [vmem:[#allocation2 + $0x1] sm:$0xff]
    %v464 = vld [vmem:[#allocation2 + $0x9] sm:$0xff]
    %v465 = vld [vmem:[#allocation2 + $0x11] sm:$0xff]
    %v466 = vld [vmem:[#allocation2 + $0x19] sm:$0xff]
    %v467 = vld [vmem:[#allocation2 + $0x21] sm:$0xff]
    %v468 = vld [vmem:[#allocation2 + $0x29] sm:$0x3f]
    %v469 = vpack.c.bf16 %v464, %v463
    %v470 = vpack.c.bf16 %v466, %v465
    %v471 = vpack.c.bf16 %v468, %v467
    %s472 = scalar_lea.vmem [#allocation8], 32
    %v473 = vld [vmem:[%s472] sm:$0xf]
    %v474 = vld [vmem:[%s472 + $0x4] sm:$0xf]
    %v475 = vld [vmem:[%s472 + $0x8] sm:$0xf]
    %v476 = vld [vmem:[%s472 + $0xc] sm:$0xf]
    %v477 = vld [vmem:[%s472 + $0x10] sm:$0xf]
    %v478 = vld [vmem:[%s472 + $0x14] sm:$0xf]
    %v479 = vld [vmem:[%s472 + $0x18] sm:$0xf]
    %v480 = vld [vmem:[%s472 + $0x1c] sm:$0xf]
    %v489 = vunpack.c.l.b16 %v473
    %v490 = vunpack.c.l.b16 %v474
    %v491 = vunpack.c.l.b16 %v475
    %v492 = vunpack.c.l.b16 %v476
    %v493 = vunpack.c.l.b16 %v477
    %v494 = vunpack.c.l.b16 %v478
    %v495 = vunpack.c.l.b16 %v479
    %v496 = vunpack.c.l.b16 %v480
    %v497 = vpack.c.b16 %v490, %v489
    %v498 = vpack.c.b16 %v492, %v491
    %v499 = vpack.c.b16 %v494, %v493
    %v500 = vpack.c.b16 %v496, %v495
    %v506 = vsel %vm94, %v469, 0
    %v509 = vsel %vm94, %v470, 0
    %v512 = vsel %vm94, %v471, 0
    %514 = vmatprep.subr.bf16.mxu0 0
    %515 = vmatpush1.bf16.msra.mxu0 %v497
    %516 = vmatprep.subr.bf16.mxu0 0
    %517 = vmatpush1.bf16.msra.mxu0 %v498
    %518 = vmatprep.subr.bf16.mxu0 0
    %519 = vmatpush1.bf16.msra.mxu0 %v499
    %520 = vmatprep.subr.bf16.mxu0 0
    %521 = vmatpush1.bf16.msra.mxu0 %v500
    %522 = vmatprep.subr.bf16.mxu0 0
    %523 = vmatpush1.bf16.msra.mxu0 0
    %524 = vmatprep.subr.bf16.mxu0 0
    %525 = vmatpush1.bf16.msra.mxu0 0
    %526 = vmatprep.subr.bf16.mxu0 0
    %527 = vmatpush1.bf16.msra.mxu0 0
    %528 = vmatprep.subr.bf16.mxu0 0
    %529 = vmatpush1.bf16.msra.mxu0 0
    %530 = vmatprep.subr.bf16.mxu0 0
    %531 = vmatpush1.bf16.msra.mxu0 0
    %532 = vmatprep.subr.bf16.mxu0 0
    %533 = vmatpush1.bf16.msra.mxu0 0
    %534 = vmatprep.subr.bf16.mxu0 0
    %535 = vmatpush1.bf16.msra.mxu0 0
    %536 = vmatprep.subr.bf16.mxu0 0
    %537 = vmatpush1.bf16.msra.mxu0 0
    %538 = vmatprep.subr.bf16.mxu0 0
    %539 = vmatpush1.bf16.msra.mxu0 0
    %540 = vmatprep.subr.bf16.mxu0 0
    %541 = vmatpush1.bf16.msra.mxu0 0
    %542 = vmatprep.subr.bf16.mxu0 0
    %543 = vmatpush1.bf16.msra.mxu0 0
    %544 = vmatprep.subr.bf16.mxu0 0
    %545 = vmatpush1.bf16.msra.mxu0 0
    %546 = vmatprep.mubr.bf16.mxu0 0
    %547 = vmatmul.mubr.bf16.gmra.mrb[0].mxu0 %v506
    %v548 = vpop.f32.mrb[0].mxu0
    %v549 = vadd.f32 0.0, %v548
    %v550 = vpop.f32.mrb[0].mxu0
    %v551 = vpop.f32.mrb[0].mxu0
    %v552 = vadd.f32 0.0, %v551
    %v553 = vpop.f32.mrb[0].mxu0
    %554 = vmatprep.mubr.bf16.mxu0 0
    %555 = vmatmul.mubr.bf16.gmra.mrb[0].mxu0 %v509
    %v556 = vpop.f32.mrb[0].mxu0
    %v557 = vpop.f32.mrb[0].mxu0
    %v558 = vpop.f32.mrb[0].mxu0
    %v559 = vadd.f32 0.0, %v558
    %v560 = vpop.f32.mrb[0].mxu0
    %561 = vmatprep.mubr.bf16.mxu0 0
    %562 = vmatmul.mubr.bf16.gmra.mrb[0].mxu0 %v512
    %v563 = vpop.f32.mrb[0].mxu0
    %v564 = vadd.f32 0.0, %v563
    %v565 = vpop.f32.mrb[0].mxu0
    %v566 = vpop.f32.mrb[0].mxu0
    %v567 = vpop.f32.mrb[0].mxu0
    %568 = vdwg.mxu0
    %v577 = vunpack.c.l.b16 %v455
    %v578 = vunpack.c.l.b16 %v456
    %v579 = vunpack.c.l.b16 %v457
    %v580 = vunpack.c.l.b16 %v458
    %v581 = vunpack.c.l.b16 %v459
    %v582 = vunpack.c.l.b16 %v460
    %v583 = vunpack.c.l.b16 %v461
    %v584 = vunpack.c.l.b16 %v462
    %v585 = vpack.c.b16 %v578, %v577
    %v586 = vpack.c.b16 %v580, %v579
    %v587 = vpack.c.b16 %v582, %v581
    %v588 = vpack.c.b16 %v584, %v583
    %v594 = vsel %vm94, %v452, 0
    %v597 = vsel %vm94, %v453, 0
    %v600 = vsel %vm94, %v454, 0
    %602 = vmatprep.subr.bf16.mxu0 0
    %603 = vmatpush1.bf16.msra.mxu0 %v585
    %604 = vmatprep.subr.bf16.mxu0 0
    %605 = vmatpush1.bf16.msra.mxu0 %v586
    %606 = vmatprep.subr.bf16.mxu0 0
    %607 = vmatpush1.bf16.msra.mxu0 %v587
    %608 = vmatprep.subr.bf16.mxu0 0
    %609 = vmatpush1.bf16.msra.mxu0 %v588
    %610 = vmatprep.subr.bf16.mxu0 0
    %611 = vmatpush1.bf16.msra.mxu0 0
    %612 = vmatprep.subr.bf16.mxu0 0
    %613 = vmatpush1.bf16.msra.mxu0 0
    %614 = vmatprep.subr.bf16.mxu0 0
    %615 = vmatpush1.bf16.msra.mxu0 0
    %616 = vmatprep.subr.bf16.mxu0 0
    %617 = vmatpush1.bf16.msra.mxu0 0
    %618 = vmatprep.subr.bf16.mxu0 0
    %619 = vmatpush1.bf16.msra.mxu0 0
    %620 = vmatprep.subr.bf16.mxu0 0
    %621 = vmatpush1.bf16.msra.mxu0 0
    %622 = vmatprep.subr.bf16.mxu0 0
    %623 = vmatpush1.bf16.msra.mxu0 0
    %624 = vmatprep.subr.bf16.mxu0 0
    %625 = vmatpush1.bf16.msra.mxu0 0
    %626 = vmatprep.subr.bf16.mxu0 0
    %627 = vmatpush1.bf16.msra.mxu0 0
    %628 = vmatprep.subr.bf16.mxu0 0
    %629 = vmatpush1.bf16.msra.mxu0 0
    %630 = vmatprep.subr.bf16.mxu0 0
    %631 = vmatpush1.bf16.msra.mxu0 0
    %632 = vmatprep.subr.bf16.mxu0 0
    %633 = vmatpush1.bf16.msra.mxu0 0
    %634 = vmatprep.mubr.bf16.mxu0 0
    %635 = vmatmul.mubr.bf16.gmra.mrb[0].mxu0 %v594
    %v636 = vpop.f32.mrb[0].mxu0
    %v637 = vadd.f32 %v549, %v636
    %v638 = vpop.f32.mrb[0].mxu0
    %v639 = vpop.f32.mrb[0].mxu0
    %v640 = vadd.f32 %v552, %v639
    %v641 = vpop.f32.mrb[0].mxu0
    %642 = vmatprep.mubr.bf16.mxu0 0
    %643 = vmatmul.mubr.bf16.gmra.mrb[0].mxu0 %v597
    %v644 = vpop.f32.mrb[0].mxu0
    %v645 = vpop.f32.mrb[0].mxu0
    %v646 = vpop.f32.mrb[0].mxu0
    %v647 = vadd.f32 %v559, %v646
    %v648 = vpop.f32.mrb[0].mxu0
    %649 = vmatprep.mubr.bf16.mxu0 0
    %650 = vmatmul.mubr.bf16.gmra.mrb[0].mxu0 %v600
    %v651 = vpop.f32.mrb[0].mxu0
    %v652 = vadd.f32 %v564, %v651
    %v653 = vpop.f32.mrb[0].mxu0
    %v654 = vpop.f32.mrb[0].mxu0
    %v655 = vpop.f32.mrb[0].mxu0
    %656 = vdwg.mxu0
    %v657 = vld [vmem:[#allocation2 + $0x2] sm:$0xff]
    %v658 = vld [vmem:[#allocation2 + $0xa] sm:$0xff]
    %v659 = vld [vmem:[#allocation2 + $0x12] sm:$0xff]
    %v660 = vld [vmem:[#allocation2 + $0x1a] sm:$0xff]
    %v661 = vld [vmem:[#allocation2 + $0x22] sm:$0xff]
    %v662 = vld [vmem:[#allocation2 + $0x2a] sm:$0x3f]
    %v663 = vpack.c.bf16 %v658, %v657
    %v664 = vpack.c.bf16 %v660, %v659
    %v665 = vpack.c.bf16 %v662, %v661
    %s666 = scalar_lea.vmem [#allocation8], 64
    %v667 = vld [vmem:[%s666] sm:$0xf]
    %v668 = vld [vmem:[%s666 + $0x4] sm:$0xf]
    %v669 = vld [vmem:[%s666 + $0x8] sm:$0xf]
    %v670 = vld [vmem:[%s666 + $0xc] sm:$0xf]
    %v671 = vld [vmem:[%s666 + $0x10] sm:$0xf]
    %v672 = vld [vmem:[%s666 + $0x14] sm:$0xf]
    %v673 = vld [vmem:[%s666 + $0x18] sm:$0xf]
    %v674 = vld [vmem:[%s666 + $0x1c] sm:$0xf]
    %v683 = vunpack.c.l.b16 %v667
    %v684 = vunpack.c.l.b16 %v668
    %v685 = vunpack.c.l.b16 %v669
    %v686 = vunpack.c.l.b16 %v670
    %v687 = vunpack.c.l.b16 %v671
    %v688 = vunpack.c.l.b16 %v672
    %v689 = vunpack.c.l.b16 %v673
    %v690 = vunpack.c.l.b16 %v674
    %v691 = vpack.c.b16 %v684, %v683
    %v692 = vpack.c.b16 %v686, %v685
    %v693 = vpack.c.b16 %v688, %v687
    %v694 = vpack.c.b16 %v690, %v689
    %v700 = vsel %vm94, %v663, 0
    %v703 = vsel %vm94, %v664, 0
    %v706 = vsel %vm94, %v665, 0
    %708 = vmatprep.subr.bf16.mxu0 0
    %709 = vmatpush1.bf16.msra.mxu0 %v691
    %710 = vmatprep.subr.bf16.mxu0 0
    %711 = vmatpush1.bf16.msra.mxu0 %v692
    %712 = vmatprep.subr.bf16.mxu0 0
    %713 = vmatpush1.bf16.msra.mxu0 %v693
    %714 = vmatprep.subr.bf16.mxu0 0
    %715 = vmatpush1.bf16.msra.mxu0 %v694
    %716 = vmatprep.subr.bf16.mxu0 0
    %717 = vmatpush1.bf16.msra.mxu0 0
    %718 = vmatprep.subr.bf16.mxu0 0
    %719 = vmatpush1.bf16.msra.mxu0 0
    %720 = vmatprep.subr.bf16.mxu0 0
    %721 = vmatpush1.bf16.msra.mxu0 0
    %722 = vmatprep.subr.bf16.mxu0 0
    %723 = vmatpush1.bf16.msra.mxu0 0
    %724 = vmatprep.subr.bf16.mxu0 0
    %725 = vmatpush1.bf16.msra.mxu0 0
    %726 = vmatprep.subr.bf16.mxu0 0
    %727 = vmatpush1.bf16.msra.mxu0 0
    %728 = vmatprep.subr.bf16.mxu0 0
    %729 = vmatpush1.bf16.msra.mxu0 0
    %730 = vmatprep.subr.bf16.mxu0 0
    %731 = vmatpush1.bf16.msra.mxu0 0
    %732 = vmatprep.subr.bf16.mxu0 0
    %733 = vmatpush1.bf16.msra.mxu0 0
    %734 = vmatprep.subr.bf16.mxu0 0
    %735 = vmatpush1.bf16.msra.mxu0 0
    %736 = vmatprep.subr.bf16.mxu0 0
    %737 = vmatpush1.bf16.msra.mxu0 0
    %738 = vmatprep.subr.bf16.mxu0 0
    %739 = vmatpush1.bf16.msra.mxu0 0
    %740 = vmatprep.mubr.bf16.mxu0 0
    %741 = vmatmul.mubr.bf16.gmra.mrb[0].mxu0 %v700
    %v742 = vpop.f32.mrb[0].mxu0
    %v743 = vadd.f32 0.0, %v742
    %v744 = vpop.f32.mrb[0].mxu0
    %v745 = vpop.f32.mrb[0].mxu0
    %v746 = vadd.f32 0.0, %v745
    %v747 = vpop.f32.mrb[0].mxu0
    %748 = vmatprep.mubr.bf16.mxu0 0
    %749 = vmatmul.mubr.bf16.gmra.mrb[0].mxu0 %v703
    %v750 = vpop.f32.mrb[0].mxu0
    %v751 = vpop.f32.mrb[0].mxu0
    %v752 = vpop.f32.mrb[0].mxu0
    %v753 = vadd.f32 0.0, %v752
    %v754 = vpop.f32.mrb[0].mxu0
    %755 = vmatprep.mubr.bf16.mxu0 0
    %756 = vmatmul.mubr.bf16.gmra.mrb[0].mxu0 %v706
    %v757 = vpop.f32.mrb[0].mxu0
    %v758 = vadd.f32 0.0, %v757
    %v759 = vpop.f32.mrb[0].mxu0
    %v760 = vpop.f32.mrb[0].mxu0
    %v761 = vpop.f32.mrb[0].mxu0
    %762 = vdwg.mxu0
    %v763 = vadd.f32 %v637, %v743
    %v764 = vadd.f32 %v640, %v746
    %v765 = vadd.f32 %v647, %v753
    %v766 = vadd.f32 %v652, %v758
    %v767 = vld [vmem:[%s4] sm:$0x1]
    %v769 = vlaneseq
    %v770 = vshrl.u32 %v769, 7
    %v771 = vsub.s32 0, %v770
    %v772 = vrot.slane %v767, %v771
    %v774 = vadd.f32 %v763, %v772
    %v775 = vadd.f32 %v764, %v772
    %v776 = vadd.f32 %v765, %v772
    %v777 = vadd.f32 %v766, %v772
    %v778 = vpack.c.bf16 %v87, %v86
    %v779 = vld [vmem:[#allocation9] sm:$0xf]
    %v780 = vld [vmem:[#allocation9 + $0x4] sm:$0xf]
    %v781 = vld [vmem:[#allocation9 + $0x8] sm:$0xf]
    %v782 = vld [vmem:[#allocation9 + $0xc] sm:$0xf]
    %v783 = vld [vmem:[#allocation9 + $0x10] sm:$0xf]
    %v784 = vld [vmem:[#allocation9 + $0x14] sm:$0xf]
    %v785 = vld [vmem:[#allocation9 + $0x18] sm:$0xf]
    %v786 = vld [vmem:[#allocation9 + $0x1c] sm:$0xf]
    %v787 = vld [vmem:[%s6] sm:$0x1]
    %v789 = vlaneseq
    %v790 = vshrl.u32 %v789, 7
    %v791 = vsub.s32 0, %v790
    %v792 = vrot.slane %v787, %v791
    %v802 = vunpack.c.l.b16 %v779
    %v803 = vunpack.c.l.b16 %v780
    %v804 = vunpack.c.l.b16 %v781
    %v805 = vunpack.c.l.b16 %v782
    %v806 = vunpack.c.l.b16 %v783
    %v807 = vunpack.c.l.b16 %v784
    %v808 = vunpack.c.l.b16 %v785
    %v809 = vunpack.c.l.b16 %v786
    %v810 = vpack.c.b16 %v803, %v802
    %v811 = vpack.c.b16 %v805, %v804
    %v812 = vpack.c.b16 %v807, %v806
    %v813 = vpack.c.b16 %v809, %v808
    %v819 = vsel %vm94, %v778, 0
    %821 = vmatprep.subr.bf16.mxu0 0
    %822 = vmatpush1.bf16.msra.mxu0 %v810
    %823 = vmatprep.subr.bf16.mxu0 0
    %824 = vmatpush1.bf16.msra.mxu0 %v811
    %825 = vmatprep.subr.bf16.mxu0 0
    %826 = vmatpush1.bf16.msra.mxu0 %v812
    %827 = vmatprep.subr.bf16.mxu0 0
    %828 = vmatpush1.bf16.msra.mxu0 %v813
    %829 = vmatprep.subr.bf16.mxu0 0
    %830 = vmatpush1.bf16.msra.mxu0 0
    %831 = vmatprep.subr.bf16.mxu0 0
    %832 = vmatpush1.bf16.msra.mxu0 0
    %833 = vmatprep.subr.bf16.mxu0 0
    %834 = vmatpush1.bf16.msra.mxu0 0
    %835 = vmatprep.subr.bf16.mxu0 0
    %836 = vmatpush1.bf16.msra.mxu0 0
    %837 = vmatprep.subr.bf16.mxu0 0
    %838 = vmatpush1.bf16.msra.mxu0 0
    %839 = vmatprep.subr.bf16.mxu0 0
    %840 = vmatpush1.bf16.msra.mxu0 0
    %841 = vmatprep.subr.bf16.mxu0 0
    %842 = vmatpush1.bf16.msra.mxu0 0
    %843 = vmatprep.subr.bf16.mxu0 0
    %844 = vmatpush1.bf16.msra.mxu0 0
    %845 = vmatprep.subr.bf16.mxu0 0
    %846 = vmatpush1.bf16.msra.mxu0 0
    %847 = vmatprep.subr.bf16.mxu0 0
    %848 = vmatpush1.bf16.msra.mxu0 0
    %849 = vmatprep.subr.bf16.mxu0 0
    %850 = vmatpush1.bf16.msra.mxu0 0
    %851 = vmatprep.subr.bf16.mxu0 0
    %852 = vmatpush1.bf16.msra.mxu0 0
    %853 = vmatprep.mubr.bf16.mxu0 0
    %854 = vmatmul.mubr.bf16.gmra.mrb[0].mxu0 %v819
    %v855 = vpop.f32.mrb[0].mxu0
    %v856 = vadd.f32 %v792, %v855
    %v857 = vpop.f32.mrb[0].mxu0
    %v858 = vpop.f32.mrb[0].mxu0
    %v859 = vadd.f32 %v792, %v858
    %v860 = vpop.f32.mrb[0].mxu0
    %861 = vdwg.mxu0
    %v862 = vadd.f32 %v774, %v856
    %v863 = vadd.f32 %v775, %v859
    %v864 = vld [vmem:[%s7] sm:$0xff]
    %vm865 = vcmask 130048
    %v867 = vsel %vm865, %v864, 0
    %869 = vmatprep.subr.mxu0 0.0
    %870 = vmatpush1.msra.mxu0 %v862
    %871 = vmatprep.subr.mxu0 0.0
    %872 = vmatpush1.msra.mxu0 %v863
    %873 = vmatprep.subr.mxu0 0.0
    %874 = vmatpush1.msra.mxu0 0.0
    %875 = vmatprep.subr.mxu0 0.0
    %876 = vmatpush1.msra.mxu0 0.0
    %877 = vmatprep.subr.mxu0 0.0
    %878 = vmatpush1.msra.mxu0 0.0
    %879 = vmatprep.subr.mxu0 0.0
    %880 = vmatpush1.msra.mxu0 0.0
    %881 = vmatprep.subr.mxu0 0.0
    %882 = vmatpush1.msra.mxu0 0.0
    %883 = vmatprep.subr.mxu0 0.0
    %884 = vmatpush1.msra.mxu0 0.0
    %885 = vmatprep.subr.mxu0 0.0
    %886 = vmatpush1.msra.mxu0 0.0
    %887 = vmatprep.subr.mxu0 0.0
    %888 = vmatpush1.msra.mxu0 0.0
    %889 = vmatprep.subr.mxu0 0.0
    %890 = vmatpush1.msra.mxu0 0.0
    %891 = vmatprep.subr.mxu0 0.0
    %892 = vmatpush1.msra.mxu0 0.0
    %893 = vmatprep.subr.mxu0 0.0
    %894 = vmatpush1.msra.mxu0 0.0
    %895 = vmatprep.subr.mxu0 0.0
    %896 = vmatpush1.msra.mxu0 0.0
    %897 = vmatprep.subr.mxu0 0.0
    %898 = vmatpush1.msra.mxu0 0.0
    %899 = vmatprep.subr.mxu0 0.0
    %900 = vmatpush1.msra.mxu0 0.0
    %901 = vmatprep.subr.mxu0 0.0
    %902 = vmatpush1.msra.mxu0 0.0
    %903 = vmatprep.subr.mxu0 0.0
    %904 = vmatpush1.msra.mxu0 0.0
    %905 = vmatprep.subr.mxu0 0.0
    %906 = vmatpush1.msra.mxu0 0.0
    %907 = vmatprep.subr.mxu0 0.0
    %908 = vmatpush1.msra.mxu0 0.0
    %909 = vmatprep.subr.mxu0 0.0
    %910 = vmatpush1.msra.mxu0 0.0
    %911 = vmatprep.subr.mxu0 0.0
    %912 = vmatpush1.msra.mxu0 0.0
    %913 = vmatprep.subr.mxu0 0.0
    %914 = vmatpush1.msra.mxu0 0.0
    %915 = vmatprep.subr.mxu0 0.0
    %916 = vmatpush1.msra.mxu0 0.0
    %917 = vmatprep.subr.mxu0 0.0
    %918 = vmatpush1.msra.mxu0 0.0
    %919 = vmatprep.subr.mxu0 0.0
    %920 = vmatpush1.msra.mxu0 0.0
    %921 = vmatprep.subr.mxu0 0.0
    %922 = vmatpush1.msra.mxu0 0.0
    %923 = vmatprep.subr.mxu0 0.0
    %924 = vmatpush1.msra.mxu0 0.0
    %925 = vmatprep.subr.mxu0 0.0
    %926 = vmatpush1.msra.mxu0 0.0
    %927 = vmatprep.subr.mxu0 0.0
    %928 = vmatpush1.msra.mxu0 0.0
    %929 = vmatprep.subr.mxu0 0.0
    %930 = vmatpush1.msra.mxu0 0.0
    %931 = vmatprep.subr.mxu0 0.0
    %932 = vmatpush1.msra.mxu0 0.0
    %933 = vmatprep.mubr.f32.mxu0 0.0
    %934 = vmatmul.mubr.f32.gmra.mrb[0].mxu0 %v867
    %v935 = vpop.f32.mrb[0].mxu0
    %v936 = vadd.f32 0.0, %v935
    %v937 = vpop.f32.mrb[0].mxu0
    %938 = vdwg.mxu0
    %939 = vst.msk [vmem:[#allocation11] sm:$0xff] %vm94, %v936
    %v940 = vpack.c.bf16 %v99, %v98
    %v941 = vld [vmem:[#allocation9] sm:$0xf]
    %v942 = vld [vmem:[#allocation9 + $0x4] sm:$0xf]
    %v943 = vld [vmem:[#allocation9 + $0x8] sm:$0xf]
    %v944 = vld [vmem:[#allocation9 + $0xc] sm:$0xf]
    %v945 = vld [vmem:[#allocation9 + $0x10] sm:$0xf]
    %v946 = vld [vmem:[#allocation9 + $0x14] sm:$0xf]
    %v947 = vld [vmem:[#allocation9 + $0x18] sm:$0xf]
    %v948 = vld [vmem:[#allocation9 + $0x1c] sm:$0xf]
    %v949 = vld [vmem:[%s6] sm:$0x1]
    %v951 = vlaneseq
    %v952 = vshrl.u32 %v951, 7
    %v953 = vsub.s32 0, %v952
    %v954 = vrot.slane %v949, %v953
    %v964 = vunpack.c.l.b16 %v941
    %v965 = vunpack.c.l.b16 %v942
    %v966 = vunpack.c.l.b16 %v943
    %v967 = vunpack.c.l.b16 %v944
    %v968 = vunpack.c.l.b16 %v945
    %v969 = vunpack.c.l.b16 %v946
    %v970 = vunpack.c.l.b16 %v947
    %v971 = vunpack.c.l.b16 %v948
    %v972 = vpack.c.b16 %v965, %v964
    %v973 = vpack.c.b16 %v967, %v966
    %v974 = vpack.c.b16 %v969, %v968
    %v975 = vpack.c.b16 %v971, %v970
    %v981 = vsel %vm94, %v940, 0
    %983 = vmatprep.subr.bf16.mxu0 0
    %984 = vmatpush1.bf16.msra.mxu0 %v972
    %985 = vmatprep.subr.bf16.mxu0 0
    %986 = vmatpush1.bf16.msra.mxu0 %v973
    %987 = vmatprep.subr.bf16.mxu0 0
    %988 = vmatpush1.bf16.msra.mxu0 %v974
    %989 = vmatprep.subr.bf16.mxu0 0
    %990 = vmatpush1.bf16.msra.mxu0 %v975
    %991 = vmatprep.subr.bf16.mxu0 0
    %992 = vmatpush1.bf16.msra.mxu0 0
    %993 = vmatprep.subr.bf16.mxu0 0
    %994 = vmatpush1.bf16.msra.mxu0 0
    %995 = vmatprep.subr.bf16.mxu0 0
    %996 = vmatpush1.bf16.msra.mxu0 0
    %997 = vmatprep.subr.bf16.mxu0 0
    %998 = vmatpush1.bf16.msra.mxu0 0
    %999 = vmatprep.subr.bf16.mxu0 0
    %1000 = vmatpush1.bf16.msra.mxu0 0
    %1001 = vmatprep.subr.bf16.mxu0 0
    %1002 = vmatpush1.bf16.msra.mxu0 0
    %1003 = vmatprep.subr.bf16.mxu0 0
    %1004 = vmatpush1.bf16.msra.mxu0 0
    %1005 = vmatprep.subr.bf16.mxu0 0
    %1006 = vmatpush1.bf16.msra.mxu0 0
    %1007 = vmatprep.subr.bf16.mxu0 0
    %1008 = vmatpush1.bf16.msra.mxu0 0
    %1009 = vmatprep.subr.bf16.mxu0 0
    %1010 = vmatpush1.bf16.msra.mxu0 0
    %1011 = vmatprep.subr.bf16.mxu0 0
    %1012 = vmatpush1.bf16.msra.mxu0 0
    %1013 = vmatprep.subr.bf16.mxu0 0
    %1014 = vmatpush1.bf16.msra.mxu0 0
    %1015 = vmatprep.mubr.bf16.mxu0 0
    %1016 = vmatmul.mubr.bf16.gmra.mrb[0].mxu0 %v981
    %v1017 = vpop.f32.mrb[0].mxu0
    %v1018 = vadd.f32 %v954, %v1017
    %v1019 = vpop.f32.mrb[0].mxu0
    %v1020 = vpop.f32.mrb[0].mxu0
    %v1021 = vadd.f32 %v954, %v1020
    %v1022 = vpop.f32.mrb[0].mxu0
    %1023 = vdwg.mxu0
    %v1024 = vadd.f32 %v776, %v1018
    %v1025 = vadd.f32 %v777, %v1021
    %v1026 = vld [vmem:[%s7] sm:$0xff]
    %v1028 = vsel %vm865, %v1026, 0
    %1030 = vmatprep.subr.mxu0 0.0
    %1031 = vmatpush1.msra.mxu0 %v1024
    %1032 = vmatprep.subr.mxu0 0.0
    %1033 = vmatpush1.msra.mxu0 %v1025
    %1034 = vmatprep.subr.mxu0 0.0
    %1035 = vmatpush1.msra.mxu0 0.0
    %1036 = vmatprep.subr.mxu0 0.0
    %1037 = vmatpush1.msra.mxu0 0.0
    %1038 = vmatprep.subr.mxu0 0.0
    %1039 = vmatpush1.msra.mxu0 0.0
    %1040 = vmatprep.subr.mxu0 0.0
    %1041 = vmatpush1.msra.mxu0 0.0
    %1042 = vmatprep.subr.mxu0 0.0
    %1043 = vmatpush1.msra.mxu0 0.0
    %1044 = vmatprep.subr.mxu0 0.0
    %1045 = vmatpush1.msra.mxu0 0.0
    %1046 = vmatprep.subr.mxu0 0.0
    %1047 = vmatpush1.msra.mxu0 0.0
    %1048 = vmatprep.subr.mxu0 0.0
    %1049 = vmatpush1.msra.mxu0 0.0
    %1050 = vmatprep.subr.mxu0 0.0
    %1051 = vmatpush1.msra.mxu0 0.0
    %1052 = vmatprep.subr.mxu0 0.0
    %1053 = vmatpush1.msra.mxu0 0.0
    %1054 = vmatprep.subr.mxu0 0.0
    %1055 = vmatpush1.msra.mxu0 0.0
    %1056 = vmatprep.subr.mxu0 0.0
    %1057 = vmatpush1.msra.mxu0 0.0
    %1058 = vmatprep.subr.mxu0 0.0
    %1059 = vmatpush1.msra.mxu0 0.0
    %1060 = vmatprep.subr.mxu0 0.0
    %1061 = vmatpush1.msra.mxu0 0.0
    %1062 = vmatprep.subr.mxu0 0.0
    %1063 = vmatpush1.msra.mxu0 0.0
    %1064 = vmatprep.subr.mxu0 0.0
    %1065 = vmatpush1.msra.mxu0 0.0
    %1066 = vmatprep.subr.mxu0 0.0
    %1067 = vmatpush1.msra.mxu0 0.0
    %1068 = vmatprep.subr.mxu0 0.0
    %1069 = vmatpush1.msra.mxu0 0.0
    %1070 = vmatprep.subr.mxu0 0.0
    %1071 = vmatpush1.msra.mxu0 0.0
    %1072 = vmatprep.subr.mxu0 0.0
    %1073 = vmatpush1.msra.mxu0 0.0
    %1074 = vmatprep.subr.mxu0 0.0
    %1075 = vmatpush1.msra.mxu0 0.0
    %1076 = vmatprep.subr.mxu0 0.0
    %1077 = vmatpush1.msra.mxu0 0.0
    %1078 = vmatprep.subr.mxu0 0.0
    %1079 = vmatpush1.msra.mxu0 0.0
    %1080 = vmatprep.subr.mxu0 0.0
    %1081 = vmatpush1.msra.mxu0 0.0
    %1082 = vmatprep.subr.mxu0 0.0
    %1083 = vmatpush1.msra.mxu0 0.0
    %1084 = vmatprep.subr.mxu0 0.0
    %1085 = vmatpush1.msra.mxu0 0.0
    %1086 = vmatprep.subr.mxu0 0.0
    %1087 = vmatpush1.msra.mxu0 0.0
    %1088 = vmatprep.subr.mxu0 0.0
    %1089 = vmatpush1.msra.mxu0 0.0
    %1090 = vmatprep.subr.mxu0 0.0
    %1091 = vmatpush1.msra.mxu0 0.0
    %1092 = vmatprep.subr.mxu0 0.0
    %1093 = vmatpush1.msra.mxu0 0.0
    %1094 = vmatprep.mubr.f32.mxu0 0.0
    %1095 = vmatmul.mubr.f32.gmra.mrb[0].mxu0 %v1028
    %v1096 = vpop.f32.mrb[0].mxu0
    %v1097 = vadd.f32 0.0, %v1096
    %v1098 = vpop.f32.mrb[0].mxu0
    %1099 = vdwg.mxu0
    %s1100 = scalar_lea.vmem [#allocation11], 8
    %1101 = vst.msk [vmem:[%s1100] sm:$0xff] %vm94, %v1097
    // Predicated region
    $region50: #{tpu_custom_call.1} parent=1 // pred_check
      _
    $region51: #{tpu_custom_call.1} parent=1 // pred_check_branch
      %1103 = sbr.rel (0) target = $region53
    $region52: #{tpu_custom_call.1} parent=1 // pred_region
      %s1105 = ssub.s32 256, 256
      %1106 = vsyncadd [#allocation5], %s1105
      %s1107 = sshll.u32 [#allocation11], 4
      %s1108 = int_to_ptr.vmem [resolvable:$true] %s1107
      %1113 = dma.vmem_to_hbm [thread:$0]  %s1108, 256, %s8, [#allocation5], 128, 128, 8
    $region53: #{tpu_custom_call.1} parent=1 // pred_fallthru
      _
    // Predicated region
    $region54: #{tpu_custom_call.1} parent=1 // pred_check
      _
    $region55: #{tpu_custom_call.1} parent=1 // pred_check_branch
      %1115 = sbr.rel (0) target = $region57
    $region56: #{tpu_custom_call.1} parent=1 // pred_region
      %1116 = dma.done [#allocation5], 256
    $region57: #{tpu_custom_call.1} parent=1 // pred_fallthru
      _
    %1117 = vsyncpa [#allocation4], 1
    %1118 = vsyncpa [#allocation7], 1
    %1119 = vsyncpa [#allocation10], 1
    %1120 = vsyncpa [#allocation5], 1

</llo_original>
